<compile_context>
chip_gen: v7x
topology: tpu7x:2x2x1
jax: 0.10.0
libtpu: 0.0.40
codegen_flags: <defaults>
</compile_context>

<pallas_src>
import functools

import jax
import jax.numpy as jnp
from jax.experimental import pallas as pl
from jax.experimental.pallas import tpu as pltpu


_MIN_PALLAS_ROWS = 512            # below this, XLA's fused gather wins
_ONE_HOT_MAX_ACTIONS = 2048       # one-hot MXU path only for small vocabularies
_ONE_HOT_TILE_BYTES = 4 << 20     # budget for the (TILE_B, A) one-hot temporary
_GATHER_TILE_BYTES = 4 << 20      # budget for the (TILE_B, D) gather scratch
_GATHER_DMA_WINDOW = 8            # row DMAs kept in flight per tile
_GATHER_MAX_ROWS_PER_CALL = 32768  # keeps the scalar-prefetched SMEM index array small


def _round_up(x, m):
    return (x + m - 1) // m * m


@functools.lru_cache(maxsize=None)
def _vmem_capacity_bytes():
    try:
        return int(pltpu.get_tpu_info().vmem_capacity_bytes)
    except Exception:
        return 64 << 20  # v7x per-TensorCore VMEM: most conservative assumption


def _resident_table_limit_bytes():
    # v5e/v6e: 128 MiB VMEM -> allow tables up to 32 MiB resident.
    # v7x: 64 MiB per TensorCore, and with a "parallel" grid each of its two
    # cores holds its own copy of the table -> keep the cap at 12 MiB.
    return (32 << 20) if _vmem_capacity_bytes() >= (128 << 20) else (12 << 20)


# ---------------------------------------------------------------------------
# Path 2: VMEM-resident table, one-hot MXU gather, large dense output tiles.
# ---------------------------------------------------------------------------
def _onehot_embed_kernel(idx_ref, table_ref, out_ref):
    # idx_ref:   (TILE_B, 1) int32   — this tile's action indices
    # table_ref: (A, D)              — full table, resident in VMEM
    # out_ref:   (TILE_B, D)         — lane/sublane-dense output tile
    tile_b = idx_ref.shape[0]
    num_actions = table_ref.shape[0]
    idx = idx_ref[...]                                               # (TILE_B, 1)
    iota = jax.lax.broadcasted_iota(jnp.int32, (tile_b, num_actions), 1)
    one_hot = (idx == iota).astype(table_ref.dtype)                  # (TILE_B, A)
    out_ref[...] = jnp.dot(
        one_hot, table_ref[...], preferred_element_type=jnp.float32
    ).astype(out_ref.dtype)


def _embed_resident(flat_idx, table):
    num_actions, d = table.shape
    n = flat_idx.shape[0]
    itemsize = jnp.dtype(table.dtype).itemsize

    # Rows per grid step: as large as the (TILE_B, A) one-hot temporary budget
    # allows (amortizes the ~0.35 us/step pipeline overhead), capped at 1024.
    max_tile_onehot = max(32, (_ONE_HOT_TILE_BYTES // (num_actions * 4)) // 32 * 32)
    tile_b = min(1024, max_tile_onehot, _round_up(n, 32))
    n_pad = _round_up(n, tile_b)
    num_tiles = n_pad // tile_b

    # Pad with index 0 (valid row); padded rows are sliced off below.
    idx2d = jnp.pad(flat_idx, (0, n_pad - n)).reshape(n_pad, 1)

    table_bytes = num_actions * d * itemsize
    out_tile_bytes = tile_b * d * itemsize
    onehot_bytes = tile_b * num_actions * 4
    # Budget: table (counted 2x so a double-buffered retry also fits), idx/out
    # double buffers, one-hot + iota temporaries, compiler-scratch headroom.
    vmem_limit = (
        2 * table_bytes
        + 2 * (tile_b * 4 + out_tile_bytes)
        + 2 * onehot_bytes
        + (4 << 20)
    )
    vmem_limit = int(min(max(vmem_limit, 16 << 20),
                         _vmem_capacity_bytes() - (4 << 20)))

    cost = pl.CostEstimate(
        flops=int(2 * n_pad * num_actions * d),
        transcendentals=0,
        bytes_accessed=int(n_pad * 4 + table_bytes + n_pad * d * itemsize),
    )

    idx_spec = pl.BlockSpec((tile_b, 1), lambda i: (i, 0))
    out_spec = pl.BlockSpec((tile_b, d), lambda i: (i, 0))

    def run(table_spec):
        return pl.pallas_call(
            _onehot_embed_kernel,
            out_shape=jax.ShapeDtypeStruct((n_pad, d), table.dtype),
            grid_spec=pltpu.PrefetchScalarGridSpec(
                num_scalar_prefetch=0,
                grid=(num_tiles,),
                in_specs=[idx_spec, table_spec],
                out_specs=out_spec,
            ),
            compiler_params=pltpu.CompilerParams(
                # Independent output tiles: v7x's 2 TensorCores split them.
                dimension_semantics=("parallel",),
                vmem_limit_bytes=vmem_limit,
            ),
            cost_estimate=cost,
        )(idx2d, table)

    try:
        # Single-buffer the resident table: its block index never changes, so
        # default double-buffering would reserve 2x table bytes for nothing.
        out = run(pl.BlockSpec((num_actions, d), lambda i: (0, 0),
                               pipeline_mode=pl.Buffered(1)))
    except Exception:
        # Fallback for toolchains without Buffered(1) support.
        out = run(pl.BlockSpec((num_actions, d), lambda i: (0, 0)))

    return out[:n]


# ---------------------------------------------------------------------------
# Path 3: batched manual-DMA gather (table stays in HBM).
# ---------------------------------------------------------------------------
def _gather_dma_kernel(idx_ref, table_ref, out_ref, buf_ref, sems, *, window):
    # idx_ref:   (n_pad,) int32 in SMEM (scalar-prefetched)
    # table_ref: (A, D) raw HBM ref (memory_space=pl.ANY)
    # out_ref:   (TILE_B, D) VMEM output tile
    # buf_ref:   (TILE_B, D) VMEM scratch
    # sems:      (window,) DMA semaphores
    tile_b = out_ref.shape[0]
    base = pl.program_id(0) * tile_b

    def issue(r):
        pltpu.make_async_copy(
            table_ref.at[idx_ref[base + r]], buf_ref.at[r], sems.at[r % window]
        ).start()

    # Prime the ring: `window` row copies in flight.
    for r in range(window):
        issue(r)

    # Steady state: wait row r, then refill its semaphore slot with row r+window.
    @pl.loop(0, tile_b)
    def _(r):
        pltpu.make_async_copy(
            table_ref.at[0], buf_ref.at[r], sems.at[r % window]
        ).wait()

        @pl.when(r + window < tile_b)
        def _():
            issue(r + window)

    # One dense (TILE_B, D) store -> pipelined lane-dense writeback to HBM.
    out_ref[...] = buf_ref[...]


def _gather_dma_call(flat_idx, table):
    num_actions, d = table.shape
    n = flat_idx.shape[0]
    itemsize = jnp.dtype(table.dtype).itemsize

    row_bytes = d * itemsize
    tile_b = min(256,
                 max(8, (_GATHER_TILE_BYTES // row_bytes) // 8 * 8),
                 _round_up(n, 8))
    n_pad = _round_up(n, tile_b)
    num_tiles = n_pad // tile_b
    window = min(_GATHER_DMA_WINDOW, tile_b)

    idx = jnp.pad(flat_idx, (0, n_pad - n))  # pad with valid index 0

    tile_bytes = tile_b * row_bytes
    vmem_limit = int(min(max(3 * tile_bytes + (4 << 20), 16 << 20),
                         _vmem_capacity_bytes() - (4 << 20)))

    out = pl.pallas_call(
        functools.partial(_gather_dma_kernel, window=window),
        out_shape=jax.ShapeDtypeStruct((n_pad, d), table.dtype),
        grid_spec=pltpu.PrefetchScalarGridSpec(
            num_scalar_prefetch=1,
            grid=(num_tiles,),
            in_specs=[pl.BlockSpec(memory_space=pl.ANY)],  # table stays in HBM
            out_specs=pl.BlockSpec((tile_b, d), lambda i, idx_pref: (i, 0)),
            scratch_shapes=[
                pltpu.VMEM((tile_b, d), table.dtype),
                pltpu.SemaphoreType.DMA((window,)),
            ],
        ),
        compiler_params=pltpu.CompilerParams(
            dimension_semantics=("parallel",),  # rows independent
            vmem_limit_bytes=vmem_limit,
        ),
    )(idx, table)
    return out[:n]


def _embed_gather_dma(flat_idx, table):
    n = flat_idx.shape[0]
    if n <= _GATHER_MAX_ROWS_PER_CALL:
        return _gather_dma_call(flat_idx, table)
    # Chunk so the scalar-prefetched index array stays comfortably within SMEM.
    parts = []
    for s in range(0, n, _GATHER_MAX_ROWS_PER_CALL):
        parts.append(_gather_dma_call(flat_idx[s:s + _GATHER_MAX_ROWS_PER_CALL], table))
    return jnp.concatenate(parts, axis=0)


# ---------------------------------------------------------------------------
# Public wrapper — matches PyTorch nn.Embedding forward semantics.
# ---------------------------------------------------------------------------
def action_embedding(action, embedding_table):
    """Pallas equivalent of nn.Embedding(num_actions, embedding_dim)(action)."""
    num_actions, embedding_dim = embedding_table.shape
    action = jnp.asarray(action)
    out_shape = jnp.shape(action) + (embedding_dim,)

    flat_idx = action.astype(jnp.int32).reshape(-1)
    n = flat_idx.shape[0]
    if n == 0:
        return jnp.zeros(out_shape, embedding_table.dtype)

    # TODO(synk): PyTorch raises on out-of-range indices; we clamp instead, as
    # an unchecked OOB gather on TPU reads garbage or faults.
    flat_idx = jnp.clip(flat_idx, 0, num_actions - 1)

    if n < _MIN_PALLAS_ROWS:
        # Tiny batch: XLA's fused gather moves only n*D bytes; no kernel launch.
        return embedding_table[flat_idx].reshape(out_shape)

    itemsize = jnp.dtype(embedding_table.dtype).itemsize
    table_bytes = num_actions * embedding_dim * itemsize
    is_float = jnp.issubdtype(embedding_table.dtype, jnp.floating)

    use_onehot = (
        is_float                                        # v7x MXU has no int path
        and num_actions <= _ONE_HOT_MAX_ACTIONS         # bounds one-hot temporaries
        and table_bytes <= _resident_table_limit_bytes()
        and n * 4 >= num_actions                        # reading whole table pays off
    )

    if use_onehot:
        table = embedding_table
        d_pad = _round_up(embedding_dim, 128)
        if d_pad != embedding_dim:
            # Lane-dense output tiles -> unmasked stores on the writeback path.
            table = jnp.pad(table, ((0, 0), (0, d_pad - embedding_dim)))
        out_flat = _embed_resident(flat_idx, table)[:, :embedding_dim]
    else:
        out_flat = _embed_gather_dma(flat_idx, embedding_table)

    return out_flat.reshape(out_shape)


if __name__ == "__main__":
    num_actions = 16
    embedding_dim = 128

    key = jax.random.PRNGKey(0)
    k_table, k_a1, k_a2, k_a3, k_a4, k_t80 = jax.random.split(key, 6)

    embedding_table = jax.random.normal(
        k_table, (num_actions, embedding_dim), dtype=jnp.float32)

    # 1) 1-D batch large enough for the VMEM-resident one-hot MXU path.
    action1 = jax.random.randint(k_a1, (640,), 0, num_actions, dtype=jnp.int32)
    out1 = action_embedding(action1, embedding_table)
    jax.block_until_ready(out1)
    assert out1.shape == (640, embedding_dim)
    assert jnp.allclose(out1, embedding_table[action1]), "one-hot path mismatch"

    # 2) 2-D batch (exercises reshape + dispatch; still the one-hot path).
    action2 = jax.random.randint(k_a2, (4, 160), 0, num_actions, dtype=jnp.int32)
    out2 = action_embedding(action2, embedding_table)
    jax.block_until_ready(out2)
    assert out2.shape == (4, 160, embedding_dim)
    assert jnp.allclose(out2, embedding_table[action2]), "2-D dispatch mismatch"

    # 3) Tiny batch -> XLA gather path (no kernel launch).
    action3 = jax.random.randint(k_a3, (8,), 0, num_actions, dtype=jnp.int32)
    out3 = action_embedding(action3, embedding_table)
    jax.block_until_ready(out3)
    assert out3.shape == (8, embedding_dim)
    assert jnp.allclose(out3, embedding_table[action3]), "small-batch path mismatch"

    # 4) Manual-DMA gather fallback, exercised directly (dispatch only uses it
    #    for vocabularies/tables too large for the resident path).
    out4 = _embed_gather_dma(action1, embedding_table)
    jax.block_until_ready(out4)
    assert out4.shape == (640, embedding_dim)
    assert jnp.allclose(out4, embedding_table[action1]), "DMA-gather path mismatch"

    # 5) Non-128-aligned embedding_dim (exercises lane padding + slice).
    table80 = jax.random.normal(k_t80, (num_actions, 80), dtype=jnp.float32)
    action5 = jax.random.randint(k_a4, (544,), 0, num_actions, dtype=jnp.int32)
    out5 = action_embedding(action5, table80)
    jax.block_until_ready(out5)
    assert out5.shape == (544, 80)
    assert jnp.allclose(out5, table80[action5]), "lane-padding path mismatch"

    print("KERNEL_OK")
</pallas_src>

<mosaic_0001>
module attributes {stable_mosaic.version = 11 : i64} {
  func.func @_onehot_embed_kernel(%arg0: i32, %arg1: memref<640x1xi32, #tpu.memory_space<vmem>>, %arg2: memref<16x128xf32, #tpu.memory_space<vmem>>, %arg3: memref<640x128xf32, #tpu.memory_space<vmem>>) attributes {dimension_semantics = [#tpu.dimension_semantics<parallel>], iteration_bounds = array<i64: 1>, scalar_prefetch = 0 : i64, scratch_operands = 0 : i64, tpu.core_type = #tpu.core_type<tc>, window_params = [{transform_indices = @transform_0, window_bounds = array<i64: 640, 1>}, {pipeline_mode = #tpu.pipeline_mode<synchronous>, transform_indices = @transform_1, window_bounds = array<i64: 16, 128>}, {transform_indices = @transform_2, window_bounds = array<i64: 640, 128>}]} {
    %c0 = arith.constant 0 : index
    %c0_0 = arith.constant 0 : index
    %0 = vector.load %arg1[%c0, %c0_0] : memref<640x1xi32, #tpu.memory_space<vmem>>, vector<640x1xi32>
    %1 = tpu.iota {dimensions = array<i32: 1>} : vector<640x16xi32>
    %2 = vector.broadcast %0 : vector<640x1xi32> to vector<640x16xi32>
    %3 = arith.cmpi eq, %2, %1 : vector<640x16xi32>
    %4 = arith.extui %3 : vector<640x16xi1> to vector<640x16xi32>
    %5 = arith.sitofp %4 : vector<640x16xi32> to vector<640x16xf32>
    %c0_1 = arith.constant 0 : index
    %c0_2 = arith.constant 0 : index
    %6 = vector.load %arg2[%c0_1, %c0_2] : memref<16x128xf32, #tpu.memory_space<vmem>>, vector<16x128xf32>
    %cst = arith.constant dense<0.000000e+00> : vector<640x128xf32>
    %7 = tpu.matmul %5, %6, %cst {dimension_numbers = #tpu.dot_dimension_numbers<[1], [0], [0], [1], [0, 0, 1, 1], [], []>} : vector<640x16xf32>, vector<16x128xf32>, vector<640x128xf32> -> vector<640x128xf32>
    %c0_3 = arith.constant 0 : index
    %c0_4 = arith.constant 0 : index
    %8 = vector.load %arg3[%c0_3, %c0_4] : memref<640x128xf32, #tpu.memory_space<vmem>>, vector<640x128xf32>
    tpu.vector_store %arg3[%c0_3, %c0_4], %7 {strides = array<i32>} : memref<640x128xf32, #tpu.memory_space<vmem>>, vector<640x128xf32>,
    return
  }
  func.func @transform_0(%arg0: i32) -> (i32, i32) {
    %c0_i32 = arith.constant 0 : i32
    %c0_i32_0 = arith.constant 0 : i32
    return %arg0, %c0_i32 : i32, i32
  }
  func.func @transform_1(%arg0: i32) -> (i32, i32) {
    %c0_i32 = arith.constant 0 : i32
    %c0_i32_0 = arith.constant 0 : i32
    %c0_i32_1 = arith.constant 0 : i32
    return %c0_i32, %c0_i32_0 : i32, i32
  }
  func.func @transform_2(%arg0: i32) -> (i32, i32) {
    %c0_i32 = arith.constant 0 : i32
    %c0_i32_0 = arith.constant 0 : i32
    return %arg0, %c0_i32 : i32, i32
  }
}

module attributes {stable_mosaic.version = 11 : i64} {
  func.func @_onehot_embed_kernel(%arg0: i32, %arg1: memref<640x1xi32, #tpu.memory_space<vmem>>, %arg2: memref<16x128xf32, #tpu.memory_space<vmem>>, %arg3: memref<640x128xf32, #tpu.memory_space<vmem>>) attributes {dimension_semantics = [#tpu.dimension_semantics<parallel>], iteration_bounds = array<i64: 1>, scalar_prefetch = 0 : i64, scratch_operands = 0 : i64, tpu.core_type = #tpu.core_type<tc>, window_params = [{transform_indices = @transform_0, window_bounds = array<i64: 640, 1>}, {pipeline_mode = #tpu.pipeline_mode<synchronous>, transform_indices = @transform_1, window_bounds = array<i64: 16, 128>}, {transform_indices = @transform_2, window_bounds = array<i64: 640, 128>}]} {
    %c0 = arith.constant 0 : index
    %c0_0 = arith.constant 0 : index
    %0 = vector.load %arg1[%c0, %c0_0] : memref<640x1xi32, #tpu.memory_space<vmem>>, vector<640x1xi32>
    %1 = tpu.iota {dimensions = array<i32: 1>} : vector<640x16xi32>
    %2 = vector.broadcast %0 : vector<640x1xi32> to vector<640x16xi32>
    %3 = arith.cmpi eq, %2, %1 : vector<640x16xi32>
    %4 = arith.extui %3 : vector<640x16xi1> to vector<640x16xi32>
    %5 = arith.sitofp %4 : vector<640x16xi32> to vector<640x16xf32>
    %c0_1 = arith.constant 0 : index
    %c0_2 = arith.constant 0 : index
    %6 = vector.load %arg2[%c0_1, %c0_2] : memref<16x128xf32, #tpu.memory_space<vmem>>, vector<16x128xf32>
    %cst = arith.constant dense<0.000000e+00> : vector<640x128xf32>
    %7 = tpu.matmul %5, %6, %cst {dimension_numbers = #tpu.dot_dimension_numbers<[1], [0], [0], [1], [0, 0, 1, 1], [], []>} : vector<640x16xf32>, vector<16x128xf32>, vector<640x128xf32> -> vector<640x128xf32>
    %c0_3 = arith.constant 0 : index
    %c0_4 = arith.constant 0 : index
    %8 = vector.load %arg3[%c0_3, %c0_4] : memref<640x128xf32, #tpu.memory_space<vmem>>, vector<640x128xf32>
    tpu.vector_store %arg3[%c0_3, %c0_4], %7 {strides = array<i32>} : memref<640x128xf32, #tpu.memory_space<vmem>>, vector<640x128xf32>,
    return
  }
  func.func @transform_0(%arg0: i32) -> (i32, i32) {
    %c0_i32 = arith.constant 0 : i32
    %c0_i32_0 = arith.constant 0 : i32
    return %arg0, %c0_i32 : i32, i32
  }
  func.func @transform_1(%arg0: i32) -> (i32, i32) {
    %c0_i32 = arith.constant 0 : i32
    %c0_i32_0 = arith.constant 0 : i32
    %c0_i32_1 = arith.constant 0 : i32
    return %c0_i32, %c0_i32_0 : i32, i32
  }
  func.func @transform_2(%arg0: i32) -> (i32, i32) {
    %c0_i32 = arith.constant 0 : i32
    %c0_i32_0 = arith.constant 0 : i32
    return %arg0, %c0_i32 : i32, i32
  }
}

</mosaic_0001>

<llo_original>
// kernel: tpu_custom_call.1
$region0: #{tpu_custom_call.1}
  #allocation0 [shape = 'u32[]', space=smem, size = 0x4, offset = 0x4, fixed_abs, tag = 'smem constant byte address 0x4 - core index']
  #allocation1 [shape = 'u32[144,128]{1,0:T(1,128)}', space=vmem, size = 0x12000, scoped, tag = 'internal scratch']
  %s0 = inlined_call_operand.vmem [shape: s32[640,1], index: 0, kind: input, shape index: {}]
  %s1 = inlined_call_operand.vmem [shape: f32[16,128], index: 1, kind: input, shape index: {}]
  %s2 = inlined_call_operand.hbm [shape: f32[640,128], index: 2, kind: output, shape index: {}]
  %s3 = sld [smem:[#allocation0]]
  $region18: #{tpu_custom_call.1} parent=0
    _
  %s5 = ssub.s32 1, %s3
  %s6 = scalar_select 0, %s5, %s3
  $region1: #{tpu_custom_call.1} parent=0
    #allocation2 [shape = 'u8[327680]{0}', space=vmem, size = 0x50000, scoped, tag = 'output window, operand 0, single buffered']
    #allocation3 [shape = 's32[1]{0}', space=sflag, size = 0x4, scoped, tag = 'scoped memory for tpu_custom_call.1']
    %7 = vsyncpa [#allocation3], 0
    // Predicated region
    $region2: #{tpu_custom_call.1} parent=1 // pred_check
      _
    $region3: #{tpu_custom_call.1} parent=1 // pred_check_branch
      %9 = sbr.rel (0) target = $region5
    $region4: #{tpu_custom_call.1} parent=1 // pred_region
      _
    $region5: #{tpu_custom_call.1} parent=1 // pred_fallthru
      _
    // Predicated region
    $region6: #{tpu_custom_call.1} parent=1 // pred_check
      _
    $region7: #{tpu_custom_call.1} parent=1 // pred_check_branch
      %11 = sbr.rel (0) target = $region9
    $region8: #{tpu_custom_call.1} parent=1 // pred_region
      _
    $region9: #{tpu_custom_call.1} parent=1 // pred_fallthru
      _
    %v12 = vld [vmem:[%s0] sm:$0xff]
    %v13 = vld [vmem:[%s0 + $0x8] sm:$0xff]
    %v14 = vld [vmem:[%s0 + $0x10] sm:$0xff]
    %v15 = vld [vmem:[%s0 + $0x18] sm:$0xff]
    %v16 = vld [vmem:[%s0 + $0x20] sm:$0xff]
    %v17 = vld [vmem:[%s0 + $0x28] sm:$0xff]
    %v18 = vld [vmem:[%s0 + $0x30] sm:$0xff]
    %v19 = vld [vmem:[%s0 + $0x38] sm:$0xff]
    %v20 = vld [vmem:[%s0 + $0x40] sm:$0xff]
    %v21 = vld [vmem:[%s0 + $0x48] sm:$0xff]
    %v22 = vld [vmem:[%s0 + $0x50] sm:$0xff]
    %v23 = vld [vmem:[%s0 + $0x58] sm:$0xff]
    %v24 = vld [vmem:[%s0 + $0x60] sm:$0xff]
    %v25 = vld [vmem:[%s0 + $0x68] sm:$0xff]
    %v26 = vld [vmem:[%s0 + $0x70] sm:$0xff]
    %v27 = vld [vmem:[%s0 + $0x78] sm:$0xff]
    %v28 = vld [vmem:[%s0 + $0x80] sm:$0xff]
    %v29 = vld [vmem:[%s0 + $0x88] sm:$0xff]
    %v30 = vld [vmem:[%s0 + $0x90] sm:$0xff]
    %v31 = vld [vmem:[%s0 + $0x98] sm:$0xff]
    %v32 = vld [vmem:[%s0 + $0xa0] sm:$0xff]
    %v33 = vld [vmem:[%s0 + $0xa8] sm:$0xff]
    %v34 = vld [vmem:[%s0 + $0xb0] sm:$0xff]
    %v35 = vld [vmem:[%s0 + $0xb8] sm:$0xff]
    %v36 = vld [vmem:[%s0 + $0xc0] sm:$0xff]
    %v37 = vld [vmem:[%s0 + $0xc8] sm:$0xff]
    %v38 = vld [vmem:[%s0 + $0xd0] sm:$0xff]
    %v39 = vld [vmem:[%s0 + $0xd8] sm:$0xff]
    %v40 = vld [vmem:[%s0 + $0xe0] sm:$0xff]
    %v41 = vld [vmem:[%s0 + $0xe8] sm:$0xff]
    %v42 = vld [vmem:[%s0 + $0xf0] sm:$0xff]
    %v43 = vld [vmem:[%s0 + $0xf8] sm:$0xff]
    %v44 = vld [vmem:[%s0 + $0x100] sm:$0xff]
    %v45 = vld [vmem:[%s0 + $0x108] sm:$0xff]
    %v46 = vld [vmem:[%s0 + $0x110] sm:$0xff]
    %v47 = vld [vmem:[%s0 + $0x118] sm:$0xff]
    %v48 = vld [vmem:[%s0 + $0x120] sm:$0xff]
    %v49 = vld [vmem:[%s0 + $0x128] sm:$0xff]
    %v50 = vld [vmem:[%s0 + $0x130] sm:$0xff]
    %v51 = vld [vmem:[%s0 + $0x138] sm:$0xff]
    %v52 = vld [vmem:[%s0 + $0x140] sm:$0xff]
    %v53 = vld [vmem:[%s0 + $0x148] sm:$0xff]
    %v54 = vld [vmem:[%s0 + $0x150] sm:$0xff]
    %v55 = vld [vmem:[%s0 + $0x158] sm:$0xff]
    %v56 = vld [vmem:[%s0 + $0x160] sm:$0xff]
    %v57 = vld [vmem:[%s0 + $0x168] sm:$0xff]
    %v58 = vld [vmem:[%s0 + $0x170] sm:$0xff]
    %v59 = vld [vmem:[%s0 + $0x178] sm:$0xff]
    %v60 = vld [vmem:[%s0 + $0x180] sm:$0xff]
    %v61 = vld [vmem:[%s0 + $0x188] sm:$0xff]
    %v62 = vld [vmem:[%s0 + $0x190] sm:$0xff]
    %v63 = vld [vmem:[%s0 + $0x198] sm:$0xff]
    %v64 = vld [vmem:[%s0 + $0x1a0] sm:$0xff]
    %v65 = vld [vmem:[%s0 + $0x1a8] sm:$0xff]
    %v66 = vld [vmem:[%s0 + $0x1b0] sm:$0xff]
    %v67 = vld [vmem:[%s0 + $0x1b8] sm:$0xff]
    %v68 = vld [vmem:[%s0 + $0x1c0] sm:$0xff]
    %v69 = vld [vmem:[%s0 + $0x1c8] sm:$0xff]
    %v70 = vld [vmem:[%s0 + $0x1d0] sm:$0xff]
    %v71 = vld [vmem:[%s0 + $0x1d8] sm:$0xff]
    %v72 = vld [vmem:[%s0 + $0x1e0] sm:$0xff]
    %v73 = vld [vmem:[%s0 + $0x1e8] sm:$0xff]
    %v74 = vld [vmem:[%s0 + $0x1f0] sm:$0xff]
    %v75 = vld [vmem:[%s0 + $0x1f8] sm:$0xff]
    %v76 = vld [vmem:[%s0 + $0x200] sm:$0xff]
    %v77 = vld [vmem:[%s0 + $0x208] sm:$0xff]
    %v78 = vld [vmem:[%s0 + $0x210] sm:$0xff]
    %v79 = vld [vmem:[%s0 + $0x218] sm:$0xff]
    %v80 = vld [vmem:[%s0 + $0x220] sm:$0xff]
    %v81 = vld [vmem:[%s0 + $0x228] sm:$0xff]
    %v82 = vld [vmem:[%s0 + $0x230] sm:$0xff]
    %v83 = vld [vmem:[%s0 + $0x238] sm:$0xff]
    %v84 = vld [vmem:[%s0 + $0x240] sm:$0xff]
    %v85 = vld [vmem:[%s0 + $0x248] sm:$0xff]
    %v86 = vld [vmem:[%s0 + $0x250] sm:$0xff]
    %v87 = vld [vmem:[%s0 + $0x258] sm:$0xff]
    %v88 = vld [vmem:[%s0 + $0x260] sm:$0xff]
    %v89 = vld [vmem:[%s0 + $0x268] sm:$0xff]
    %v90 = vld [vmem:[%s0 + $0x270] sm:$0xff]
    %v91 = vld [vmem:[%s0 + $0x278] sm:$0xff]
    %v92 = vlaneseq
    %v93 = vand.u32 %v92, 127
    %94 = vset.pattern.permute.xlu0 0
    %95 = vperm.xlu0 %94, %v12
    %v96 = vpop.permute.xlu0 %95
    %97 = vset.pattern.permute.xlu0 0
    %98 = vperm.xlu0 %97, %v13
    %v99 = vpop.permute.xlu0 %98
    %100 = vset.pattern.permute.xlu0 0
    %101 = vperm.xlu0 %100, %v14
    %v102 = vpop.permute.xlu0 %101
    %103 = vset.pattern.permute.xlu0 0
    %104 = vperm.xlu0 %103, %v15
    %v105 = vpop.permute.xlu0 %104
    %106 = vset.pattern.permute.xlu0 0
    %107 = vperm.xlu0 %106, %v16
    %v108 = vpop.permute.xlu0 %107
    %109 = vset.pattern.permute.xlu0 0
    %110 = vperm.xlu0 %109, %v17
    %v111 = vpop.permute.xlu0 %110
    %112 = vset.pattern.permute.xlu0 0
    %113 = vperm.xlu0 %112, %v18
    %v114 = vpop.permute.xlu0 %113
    %115 = vset.pattern.permute.xlu0 0
    %116 = vperm.xlu0 %115, %v19
    %v117 = vpop.permute.xlu0 %116
    %118 = vset.pattern.permute.xlu0 0
    %119 = vperm.xlu0 %118, %v20
    %v120 = vpop.permute.xlu0 %119
    %121 = vset.pattern.permute.xlu0 0
    %122 = vperm.xlu0 %121, %v21
    %v123 = vpop.permute.xlu0 %122
    %124 = vset.pattern.permute.xlu0 0
    %125 = vperm.xlu0 %124, %v22
    %v126 = vpop.permute.xlu0 %125
    %127 = vset.pattern.permute.xlu0 0
    %128 = vperm.xlu0 %127, %v23
    %v129 = vpop.permute.xlu0 %128
    %130 = vset.pattern.permute.xlu0 0
    %131 = vperm.xlu0 %130, %v24
    %v132 = vpop.permute.xlu0 %131
    %133 = vset.pattern.permute.xlu0 0
    %134 = vperm.xlu0 %133, %v25
    %v135 = vpop.permute.xlu0 %134
    %136 = vset.pattern.permute.xlu0 0
    %137 = vperm.xlu0 %136, %v26
    %v138 = vpop.permute.xlu0 %137
    %139 = vset.pattern.permute.xlu0 0
    %140 = vperm.xlu0 %139, %v27
    %v141 = vpop.permute.xlu0 %140
    %142 = vset.pattern.permute.xlu0 0
    %143 = vperm.xlu0 %142, %v28
    %v144 = vpop.permute.xlu0 %143
    %145 = vset.pattern.permute.xlu0 0
    %146 = vperm.xlu0 %145, %v29
    %v147 = vpop.permute.xlu0 %146
    %148 = vset.pattern.permute.xlu0 0
    %149 = vperm.xlu0 %148, %v30
    %v150 = vpop.permute.xlu0 %149
    %151 = vset.pattern.permute.xlu0 0
    %152 = vperm.xlu0 %151, %v31
    %v153 = vpop.permute.xlu0 %152
    %154 = vset.pattern.permute.xlu0 0
    %155 = vperm.xlu0 %154, %v32
    %v156 = vpop.permute.xlu0 %155
    %157 = vset.pattern.permute.xlu0 0
    %158 = vperm.xlu0 %157, %v33
    %v159 = vpop.permute.xlu0 %158
    %160 = vset.pattern.permute.xlu0 0
    %161 = vperm.xlu0 %160, %v34
    %v162 = vpop.permute.xlu0 %161
    %163 = vset.pattern.permute.xlu0 0
    %164 = vperm.xlu0 %163, %v35
    %v165 = vpop.permute.xlu0 %164
    %166 = vset.pattern.permute.xlu0 0
    %167 = vperm.xlu0 %166, %v36
    %v168 = vpop.permute.xlu0 %167
    %169 = vset.pattern.permute.xlu0 0
    %170 = vperm.xlu0 %169, %v37
    %v171 = vpop.permute.xlu0 %170
    %172 = vset.pattern.permute.xlu0 0
    %173 = vperm.xlu0 %172, %v38
    %v174 = vpop.permute.xlu0 %173
    %175 = vset.pattern.permute.xlu0 0
    %176 = vperm.xlu0 %175, %v39
    %v177 = vpop.permute.xlu0 %176
    %178 = vset.pattern.permute.xlu0 0
    %179 = vperm.xlu0 %178, %v40
    %v180 = vpop.permute.xlu0 %179
    %181 = vset.pattern.permute.xlu0 0
    %182 = vperm.xlu0 %181, %v41
    %v183 = vpop.permute.xlu0 %182
    %184 = vset.pattern.permute.xlu0 0
    %185 = vperm.xlu0 %184, %v42
    %v186 = vpop.permute.xlu0 %185
    %187 = vset.pattern.permute.xlu0 0
    %188 = vperm.xlu0 %187, %v43
    %v189 = vpop.permute.xlu0 %188
    %190 = vset.pattern.permute.xlu0 0
    %191 = vperm.xlu0 %190, %v44
    %v192 = vpop.permute.xlu0 %191
    %193 = vset.pattern.permute.xlu0 0
    %194 = vperm.xlu0 %193, %v45
    %v195 = vpop.permute.xlu0 %194
    %196 = vset.pattern.permute.xlu0 0
    %197 = vperm.xlu0 %196, %v46
    %v198 = vpop.permute.xlu0 %197
    %199 = vset.pattern.permute.xlu0 0
    %200 = vperm.xlu0 %199, %v47
    %v201 = vpop.permute.xlu0 %200
    %202 = vset.pattern.permute.xlu0 0
    %203 = vperm.xlu0 %202, %v48
    %v204 = vpop.permute.xlu0 %203
    %205 = vset.pattern.permute.xlu0 0
    %206 = vperm.xlu0 %205, %v49
    %v207 = vpop.permute.xlu0 %206
    %208 = vset.pattern.permute.xlu0 0
    %209 = vperm.xlu0 %208, %v50
    %v210 = vpop.permute.xlu0 %209
    %211 = vset.pattern.permute.xlu0 0
    %212 = vperm.xlu0 %211, %v51
    %v213 = vpop.permute.xlu0 %212
    %214 = vset.pattern.permute.xlu0 0
    %215 = vperm.xlu0 %214, %v52
    %v216 = vpop.permute.xlu0 %215
    %217 = vset.pattern.permute.xlu0 0
    %218 = vperm.xlu0 %217, %v53
    %v219 = vpop.permute.xlu0 %218
    %220 = vset.pattern.permute.xlu0 0
    %221 = vperm.xlu0 %220, %v54
    %v222 = vpop.permute.xlu0 %221
    %223 = vset.pattern.permute.xlu0 0
    %224 = vperm.xlu0 %223, %v55
    %v225 = vpop.permute.xlu0 %224
    %226 = vset.pattern.permute.xlu0 0
    %227 = vperm.xlu0 %226, %v56
    %v228 = vpop.permute.xlu0 %227
    %229 = vset.pattern.permute.xlu0 0
    %230 = vperm.xlu0 %229, %v57
    %v231 = vpop.permute.xlu0 %230
    %232 = vset.pattern.permute.xlu0 0
    %233 = vperm.xlu0 %232, %v58
    %v234 = vpop.permute.xlu0 %233
    %235 = vset.pattern.permute.xlu0 0
    %236 = vperm.xlu0 %235, %v59
    %v237 = vpop.permute.xlu0 %236
    %238 = vset.pattern.permute.xlu0 0
    %239 = vperm.xlu0 %238, %v60
    %v240 = vpop.permute.xlu0 %239
    %241 = vset.pattern.permute.xlu0 0
    %242 = vperm.xlu0 %241, %v61
    %v243 = vpop.permute.xlu0 %242
    %244 = vset.pattern.permute.xlu0 0
    %245 = vperm.xlu0 %244, %v62
    %v246 = vpop.permute.xlu0 %245
    %247 = vset.pattern.permute.xlu0 0
    %248 = vperm.xlu0 %247, %v63
    %v249 = vpop.permute.xlu0 %248
    %250 = vset.pattern.permute.xlu0 0
    %251 = vperm.xlu0 %250, %v64
    %v252 = vpop.permute.xlu0 %251
    %253 = vset.pattern.permute.xlu0 0
    %254 = vperm.xlu0 %253, %v65
    %v255 = vpop.permute.xlu0 %254
    %256 = vset.pattern.permute.xlu0 0
    %257 = vperm.xlu0 %256, %v66
    %v258 = vpop.permute.xlu0 %257
    %259 = vset.pattern.permute.xlu0 0
    %260 = vperm.xlu0 %259, %v67
    %v261 = vpop.permute.xlu0 %260
    %262 = vset.pattern.permute.xlu0 0
    %263 = vperm.xlu0 %262, %v68
    %v264 = vpop.permute.xlu0 %263
    %265 = vset.pattern.permute.xlu0 0
    %266 = vperm.xlu0 %265, %v69
    %v267 = vpop.permute.xlu0 %266
    %268 = vset.pattern.permute.xlu0 0
    %269 = vperm.xlu0 %268, %v70
    %v270 = vpop.permute.xlu0 %269
    %271 = vset.pattern.permute.xlu0 0
    %272 = vperm.xlu0 %271, %v71
    %v273 = vpop.permute.xlu0 %272
    %274 = vset.pattern.permute.xlu0 0
    %275 = vperm.xlu0 %274, %v72
    %v276 = vpop.permute.xlu0 %275
    %277 = vset.pattern.permute.xlu0 0
    %278 = vperm.xlu0 %277, %v73
    %v279 = vpop.permute.xlu0 %278
    %280 = vset.pattern.permute.xlu0 0
    %281 = vperm.xlu0 %280, %v74
    %v282 = vpop.permute.xlu0 %281
    %283 = vset.pattern.permute.xlu0 0
    %284 = vperm.xlu0 %283, %v75
    %v285 = vpop.permute.xlu0 %284
    %286 = vset.pattern.permute.xlu0 0
    %287 = vperm.xlu0 %286, %v76
    %v288 = vpop.permute.xlu0 %287
    %289 = vset.pattern.permute.xlu0 0
    %290 = vperm.xlu0 %289, %v77
    %v291 = vpop.permute.xlu0 %290
    %292 = vset.pattern.permute.xlu0 0
    %293 = vperm.xlu0 %292, %v78
    %v294 = vpop.permute.xlu0 %293
    %295 = vset.pattern.permute.xlu0 0
    %296 = vperm.xlu0 %295, %v79
    %v297 = vpop.permute.xlu0 %296
    %298 = vset.pattern.permute.xlu0 0
    %299 = vperm.xlu0 %298, %v80
    %v300 = vpop.permute.xlu0 %299
    %301 = vset.pattern.permute.xlu0 0
    %302 = vperm.xlu0 %301, %v81
    %v303 = vpop.permute.xlu0 %302
    %304 = vset.pattern.permute.xlu0 0
    %305 = vperm.xlu0 %304, %v82
    %v306 = vpop.permute.xlu0 %305
    %307 = vset.pattern.permute.xlu0 0
    %308 = vperm.xlu0 %307, %v83
    %v309 = vpop.permute.xlu0 %308
    %310 = vset.pattern.permute.xlu0 0
    %311 = vperm.xlu0 %310, %v84
    %v312 = vpop.permute.xlu0 %311
    %313 = vset.pattern.permute.xlu0 0
    %314 = vperm.xlu0 %313, %v85
    %v315 = vpop.permute.xlu0 %314
    %316 = vset.pattern.permute.xlu0 0
    %317 = vperm.xlu0 %316, %v86
    %v318 = vpop.permute.xlu0 %317
    %319 = vset.pattern.permute.xlu0 0
    %320 = vperm.xlu0 %319, %v87
    %v321 = vpop.permute.xlu0 %320
    %322 = vset.pattern.permute.xlu0 0
    %323 = vperm.xlu0 %322, %v88
    %v324 = vpop.permute.xlu0 %323
    %325 = vset.pattern.permute.xlu0 0
    %326 = vperm.xlu0 %325, %v89
    %v327 = vpop.permute.xlu0 %326
    %328 = vset.pattern.permute.xlu0 0
    %329 = vperm.xlu0 %328, %v90
    %v330 = vpop.permute.xlu0 %329
    %331 = vset.pattern.permute.xlu0 0
    %332 = vperm.xlu0 %331, %v91
    %v333 = vpop.permute.xlu0 %332
    %vm334 = vcmp.eq.s32.totalorder %v96, %v93
    %vm335 = vcmp.eq.s32.totalorder %v99, %v93
    %vm336 = vcmp.eq.s32.totalorder %v102, %v93
    %vm337 = vcmp.eq.s32.totalorder %v105, %v93
    %vm338 = vcmp.eq.s32.totalorder %v108, %v93
    %vm339 = vcmp.eq.s32.totalorder %v111, %v93
    %vm340 = vcmp.eq.s32.totalorder %v114, %v93
    %vm341 = vcmp.eq.s32.totalorder %v117, %v93
    %vm342 = vcmp.eq.s32.totalorder %v120, %v93
    %vm343 = vcmp.eq.s32.totalorder %v123, %v93
    %vm344 = vcmp.eq.s32.totalorder %v126, %v93
    %vm345 = vcmp.eq.s32.totalorder %v129, %v93
    %vm346 = vcmp.eq.s32.totalorder %v132, %v93
    %vm347 = vcmp.eq.s32.totalorder %v135, %v93
    %vm348 = vcmp.eq.s32.totalorder %v138, %v93
    %vm349 = vcmp.eq.s32.totalorder %v141, %v93
    %vm350 = vcmp.eq.s32.totalorder %v144, %v93
    %vm351 = vcmp.eq.s32.totalorder %v147, %v93
    %vm352 = vcmp.eq.s32.totalorder %v150, %v93
    %vm353 = vcmp.eq.s32.totalorder %v153, %v93
    %vm354 = vcmp.eq.s32.totalorder %v156, %v93
    %vm355 = vcmp.eq.s32.totalorder %v159, %v93
    %vm356 = vcmp.eq.s32.totalorder %v162, %v93
    %vm357 = vcmp.eq.s32.totalorder %v165, %v93
    %vm358 = vcmp.eq.s32.totalorder %v168, %v93
    %vm359 = vcmp.eq.s32.totalorder %v171, %v93
    %vm360 = vcmp.eq.s32.totalorder %v174, %v93
    %vm361 = vcmp.eq.s32.totalorder %v177, %v93
    %vm362 = vcmp.eq.s32.totalorder %v180, %v93
    %vm363 = vcmp.eq.s32.totalorder %v183, %v93
    %vm364 = vcmp.eq.s32.totalorder %v186, %v93
    %vm365 = vcmp.eq.s32.totalorder %v189, %v93
    %vm366 = vcmp.eq.s32.totalorder %v192, %v93
    %vm367 = vcmp.eq.s32.totalorder %v195, %v93
    %vm368 = vcmp.eq.s32.totalorder %v198, %v93
    %vm369 = vcmp.eq.s32.totalorder %v201, %v93
    %vm370 = vcmp.eq.s32.totalorder %v204, %v93
    %vm371 = vcmp.eq.s32.totalorder %v207, %v93
    %vm372 = vcmp.eq.s32.totalorder %v210, %v93
    %vm373 = vcmp.eq.s32.totalorder %v213, %v93
    %vm374 = vcmp.eq.s32.totalorder %v216, %v93
    %vm375 = vcmp.eq.s32.totalorder %v219, %v93
    %vm376 = vcmp.eq.s32.totalorder %v222, %v93
    %vm377 = vcmp.eq.s32.totalorder %v225, %v93
    %vm378 = vcmp.eq.s32.totalorder %v228, %v93
    %vm379 = vcmp.eq.s32.totalorder %v231, %v93
    %vm380 = vcmp.eq.s32.totalorder %v234, %v93
    %vm381 = vcmp.eq.s32.totalorder %v237, %v93
    %vm382 = vcmp.eq.s32.totalorder %v240, %v93
    %vm383 = vcmp.eq.s32.totalorder %v243, %v93
    %vm384 = vcmp.eq.s32.totalorder %v246, %v93
    %vm385 = vcmp.eq.s32.totalorder %v249, %v93
    %vm386 = vcmp.eq.s32.totalorder %v252, %v93
    %vm387 = vcmp.eq.s32.totalorder %v255, %v93
    %vm388 = vcmp.eq.s32.totalorder %v258, %v93
    %vm389 = vcmp.eq.s32.totalorder %v261, %v93
    %vm390 = vcmp.eq.s32.totalorder %v264, %v93
    %vm391 = vcmp.eq.s32.totalorder %v267, %v93
    %vm392 = vcmp.eq.s32.totalorder %v270, %v93
    %vm393 = vcmp.eq.s32.totalorder %v273, %v93
    %vm394 = vcmp.eq.s32.totalorder %v276, %v93
    %vm395 = vcmp.eq.s32.totalorder %v279, %v93
    %vm396 = vcmp.eq.s32.totalorder %v282, %v93
    %vm397 = vcmp.eq.s32.totalorder %v285, %v93
    %vm398 = vcmp.eq.s32.totalorder %v288, %v93
    %vm399 = vcmp.eq.s32.totalorder %v291, %v93
    %vm400 = vcmp.eq.s32.totalorder %v294, %v93
    %vm401 = vcmp.eq.s32.totalorder %v297, %v93
    %vm402 = vcmp.eq.s32.totalorder %v300, %v93
    %vm403 = vcmp.eq.s32.totalorder %v303, %v93
    %vm404 = vcmp.eq.s32.totalorder %v306, %v93
    %vm405 = vcmp.eq.s32.totalorder %v309, %v93
    %vm406 = vcmp.eq.s32.totalorder %v312, %v93
    %vm407 = vcmp.eq.s32.totalorder %v315, %v93
    %vm408 = vcmp.eq.s32.totalorder %v318, %v93
    %vm409 = vcmp.eq.s32.totalorder %v321, %v93
    %vm410 = vcmp.eq.s32.totalorder %v324, %v93
    %vm411 = vcmp.eq.s32.totalorder %v327, %v93
    %vm412 = vcmp.eq.s32.totalorder %v330, %v93
    %vm413 = vcmp.eq.s32.totalorder %v333, %v93
    %v414 = vsel %vm334, 1, 0
    %v415 = vsel %vm335, 1, 0
    %v416 = vsel %vm336, 1, 0
    %v417 = vsel %vm337, 1, 0
    %v418 = vsel %vm338, 1, 0
    %v419 = vsel %vm339, 1, 0
    %v420 = vsel %vm340, 1, 0
    %v421 = vsel %vm341, 1, 0
    %v422 = vsel %vm342, 1, 0
    %v423 = vsel %vm343, 1, 0
    %v424 = vsel %vm344, 1, 0
    %v425 = vsel %vm345, 1, 0
    %v426 = vsel %vm346, 1, 0
    %v427 = vsel %vm347, 1, 0
    %v428 = vsel %vm348, 1, 0
    %v429 = vsel %vm349, 1, 0
    %v430 = vsel %vm350, 1, 0
    %v431 = vsel %vm351, 1, 0
    %v432 = vsel %vm352, 1, 0
    %v433 = vsel %vm353, 1, 0
    %v434 = vsel %vm354, 1, 0
    %v435 = vsel %vm355, 1, 0
    %v436 = vsel %vm356, 1, 0
    %v437 = vsel %vm357, 1, 0
    %v438 = vsel %vm358, 1, 0
    %v439 = vsel %vm359, 1, 0
    %v440 = vsel %vm360, 1, 0
    %v441 = vsel %vm361, 1, 0
    %v442 = vsel %vm362, 1, 0
    %v443 = vsel %vm363, 1, 0
    %v444 = vsel %vm364, 1, 0
    %v445 = vsel %vm365, 1, 0
    %v446 = vsel %vm366, 1, 0
    %v447 = vsel %vm367, 1, 0
    %v448 = vsel %vm368, 1, 0
    %v449 = vsel %vm369, 1, 0
    %v450 = vsel %vm370, 1, 0
    %v451 = vsel %vm371, 1, 0
    %v452 = vsel %vm372, 1, 0
    %v453 = vsel %vm373, 1, 0
    %v454 = vsel %vm374, 1, 0
    %v455 = vsel %vm375, 1, 0
    %v456 = vsel %vm376, 1, 0
    %v457 = vsel %vm377, 1, 0
    %v458 = vsel %vm378, 1, 0
    %v459 = vsel %vm379, 1, 0
    %v460 = vsel %vm380, 1, 0
    %v461 = vsel %vm381, 1, 0
    %v462 = vsel %vm382, 1, 0
    %v463 = vsel %vm383, 1, 0
    %v464 = vsel %vm384, 1, 0
    %v465 = vsel %vm385, 1, 0
    %v466 = vsel %vm386, 1, 0
    %v467 = vsel %vm387, 1, 0
    %v468 = vsel %vm388, 1, 0
    %v469 = vsel %vm389, 1, 0
    %v470 = vsel %vm390, 1, 0
    %v471 = vsel %vm391, 1, 0
    %v472 = vsel %vm392, 1, 0
    %v473 = vsel %vm393, 1, 0
    %v474 = vsel %vm394, 1, 0
    %v475 = vsel %vm395, 1, 0
    %v476 = vsel %vm396, 1, 0
    %v477 = vsel %vm397, 1, 0
    %v478 = vsel %vm398, 1, 0
    %v479 = vsel %vm399, 1, 0
    %v480 = vsel %vm400, 1, 0
    %v481 = vsel %vm401, 1, 0
    %v482 = vsel %vm402, 1, 0
    %v483 = vsel %vm403, 1, 0
    %v484 = vsel %vm404, 1, 0
    %v485 = vsel %vm405, 1, 0
    %v486 = vsel %vm406, 1, 0
    %v487 = vsel %vm407, 1, 0
    %v488 = vsel %vm408, 1, 0
    %v489 = vsel %vm409, 1, 0
    %v490 = vsel %vm410, 1, 0
    %v491 = vsel %vm411, 1, 0
    %v492 = vsel %vm412, 1, 0
    %v493 = vsel %vm413, 1, 0
    %v494 = vcvt.s32.f32 %v414
    %v495 = vcvt.s32.f32 %v415
    %v496 = vcvt.s32.f32 %v416
    %v497 = vcvt.s32.f32 %v417
    %v498 = vcvt.s32.f32 %v418
    %v499 = vcvt.s32.f32 %v419
    %v500 = vcvt.s32.f32 %v420
    %v501 = vcvt.s32.f32 %v421
    %v502 = vcvt.s32.f32 %v422
    %v503 = vcvt.s32.f32 %v423
    %v504 = vcvt.s32.f32 %v424
    %v505 = vcvt.s32.f32 %v425
    %v506 = vcvt.s32.f32 %v426
    %v507 = vcvt.s32.f32 %v427
    %v508 = vcvt.s32.f32 %v428
    %v509 = vcvt.s32.f32 %v429
    %v510 = vcvt.s32.f32 %v430
    %v511 = vcvt.s32.f32 %v431
    %v512 = vcvt.s32.f32 %v432
    %v513 = vcvt.s32.f32 %v433
    %v514 = vcvt.s32.f32 %v434
    %v515 = vcvt.s32.f32 %v435
    %v516 = vcvt.s32.f32 %v436
    %v517 = vcvt.s32.f32 %v437
    %v518 = vcvt.s32.f32 %v438
    %v519 = vcvt.s32.f32 %v439
    %v520 = vcvt.s32.f32 %v440
    %v521 = vcvt.s32.f32 %v441
    %v522 = vcvt.s32.f32 %v442
    %v523 = vcvt.s32.f32 %v443
    %v524 = vcvt.s32.f32 %v444
    %v525 = vcvt.s32.f32 %v445
    %v526 = vcvt.s32.f32 %v446
    %v527 = vcvt.s32.f32 %v447
    %v528 = vcvt.s32.f32 %v448
    %v529 = vcvt.s32.f32 %v449
    %v530 = vcvt.s32.f32 %v450
    %v531 = vcvt.s32.f32 %v451
    %v532 = vcvt.s32.f32 %v452
    %v533 = vcvt.s32.f32 %v453
    %v534 = vcvt.s32.f32 %v454
    %v535 = vcvt.s32.f32 %v455
    %v536 = vcvt.s32.f32 %v456
    %v537 = vcvt.s32.f32 %v457
    %v538 = vcvt.s32.f32 %v458
    %v539 = vcvt.s32.f32 %v459
    %v540 = vcvt.s32.f32 %v460
    %v541 = vcvt.s32.f32 %v461
    %v542 = vcvt.s32.f32 %v462
    %v543 = vcvt.s32.f32 %v463
    %v544 = vcvt.s32.f32 %v464
    %v545 = vcvt.s32.f32 %v465
    %v546 = vcvt.s32.f32 %v466
    %v547 = vcvt.s32.f32 %v467
    %v548 = vcvt.s32.f32 %v468
    %v549 = vcvt.s32.f32 %v469
    %v550 = vcvt.s32.f32 %v470
    %v551 = vcvt.s32.f32 %v471
    %v552 = vcvt.s32.f32 %v472
    %v553 = vcvt.s32.f32 %v473
    %v554 = vcvt.s32.f32 %v474
    %v555 = vcvt.s32.f32 %v475
    %v556 = vcvt.s32.f32 %v476
    %v557 = vcvt.s32.f32 %v477
    %v558 = vcvt.s32.f32 %v478
    %v559 = vcvt.s32.f32 %v479
    %v560 = vcvt.s32.f32 %v480
    %v561 = vcvt.s32.f32 %v481
    %v562 = vcvt.s32.f32 %v482
    %v563 = vcvt.s32.f32 %v483
    %v564 = vcvt.s32.f32 %v484
    %v565 = vcvt.s32.f32 %v485
    %v566 = vcvt.s32.f32 %v486
    %v567 = vcvt.s32.f32 %v487
    %v568 = vcvt.s32.f32 %v488
    %v569 = vcvt.s32.f32 %v489
    %v570 = vcvt.s32.f32 %v490
    %v571 = vcvt.s32.f32 %v491
    %v572 = vcvt.s32.f32 %v492
    %v573 = vcvt.s32.f32 %v493
    %v574 = vld [vmem:[%s1] sm:$0xff]
    %v575 = vld [vmem:[%s1 + $0x8] sm:$0xff]
    %vm576 = vcmask 130048
    %v578 = vsel %vm576, %v494, 0
    %v581 = vsel %vm576, %v495, 0
    %v584 = vsel %vm576, %v496, 0
    %v587 = vsel %vm576, %v497, 0
    %v590 = vsel %vm576, %v498, 0
    %v593 = vsel %vm576, %v499, 0
    %v596 = vsel %vm576, %v500, 0
    %v599 = vsel %vm576, %v501, 0
    %v602 = vsel %vm576, %v502, 0
    %v605 = vsel %vm576, %v503, 0
    %v608 = vsel %vm576, %v504, 0
    %v611 = vsel %vm576, %v505, 0
    %v614 = vsel %vm576, %v506, 0
    %v617 = vsel %vm576, %v507, 0
    %v620 = vsel %vm576, %v508, 0
    %v623 = vsel %vm576, %v509, 0
    %v626 = vsel %vm576, %v510, 0
    %v629 = vsel %vm576, %v511, 0
    %v632 = vsel %vm576, %v512, 0
    %v635 = vsel %vm576, %v513, 0
    %v638 = vsel %vm576, %v514, 0
    %v641 = vsel %vm576, %v515, 0
    %v644 = vsel %vm576, %v516, 0
    %v647 = vsel %vm576, %v517, 0
    %v650 = vsel %vm576, %v518, 0
    %v653 = vsel %vm576, %v519, 0
    %v656 = vsel %vm576, %v520, 0
    %v659 = vsel %vm576, %v521, 0
    %v662 = vsel %vm576, %v522, 0
    %v665 = vsel %vm576, %v523, 0
    %v668 = vsel %vm576, %v524, 0
    %v671 = vsel %vm576, %v525, 0
    %v674 = vsel %vm576, %v526, 0
    %v677 = vsel %vm576, %v527, 0
    %v680 = vsel %vm576, %v528, 0
    %v683 = vsel %vm576, %v529, 0
    %v686 = vsel %vm576, %v530, 0
    %v689 = vsel %vm576, %v531, 0
    %v692 = vsel %vm576, %v532, 0
    %v695 = vsel %vm576, %v533, 0
    %v698 = vsel %vm576, %v534, 0
    %v701 = vsel %vm576, %v535, 0
    %v704 = vsel %vm576, %v536, 0
    %v707 = vsel %vm576, %v537, 0
    %v710 = vsel %vm576, %v538, 0
    %v713 = vsel %vm576, %v539, 0
    %v716 = vsel %vm576, %v540, 0
    %v719 = vsel %vm576, %v541, 0
    %v722 = vsel %vm576, %v542, 0
    %v725 = vsel %vm576, %v543, 0
    %v728 = vsel %vm576, %v544, 0
    %v731 = vsel %vm576, %v545, 0
    %v734 = vsel %vm576, %v546, 0
    %v737 = vsel %vm576, %v547, 0
    %v740 = vsel %vm576, %v548, 0
    %v743 = vsel %vm576, %v549, 0
    %v746 = vsel %vm576, %v550, 0
    %v749 = vsel %vm576, %v551, 0
    %v752 = vsel %vm576, %v552, 0
    %v755 = vsel %vm576, %v553, 0
    %v758 = vsel %vm576, %v554, 0
    %v761 = vsel %vm576, %v555, 0
    %v764 = vsel %vm576, %v556, 0
    %v767 = vsel %vm576, %v557, 0
    %v770 = vsel %vm576, %v558, 0
    %v773 = vsel %vm576, %v559, 0
    %v776 = vsel %vm576, %v560, 0
    %v779 = vsel %vm576, %v561, 0
    %v782 = vsel %vm576, %v562, 0
    %v785 = vsel %vm576, %v563, 0
    %v788 = vsel %vm576, %v564, 0
    %v791 = vsel %vm576, %v565, 0
    %v794 = vsel %vm576, %v566, 0
    %v797 = vsel %vm576, %v567, 0
    %v800 = vsel %vm576, %v568, 0
    %v803 = vsel %vm576, %v569, 0
    %v806 = vsel %vm576, %v570, 0
    %v809 = vsel %vm576, %v571, 0
    %v812 = vsel %vm576, %v572, 0
    %v815 = vsel %vm576, %v573, 0
    %817 = vmatprep.subr.mxu0 0.0
    %818 = vmatpush1.msra.mxu0 %v574
    %819 = vmatprep.subr.mxu0 0.0
    %820 = vmatpush1.msra.mxu0 %v575
    %821 = vmatprep.subr.mxu0 0.0
    %822 = vmatpush1.msra.mxu0 0.0
    %823 = vmatprep.subr.mxu0 0.0
    %824 = vmatpush1.msra.mxu0 0.0
    %825 = vmatprep.subr.mxu0 0.0
    %826 = vmatpush1.msra.mxu0 0.0
    %827 = vmatprep.subr.mxu0 0.0
    %828 = vmatpush1.msra.mxu0 0.0
    %829 = vmatprep.subr.mxu0 0.0
    %830 = vmatpush1.msra.mxu0 0.0
    %831 = vmatprep.subr.mxu0 0.0
    %832 = vmatpush1.msra.mxu0 0.0
    %833 = vmatprep.subr.mxu0 0.0
    %834 = vmatpush1.msra.mxu0 0.0
    %835 = vmatprep.subr.mxu0 0.0
    %836 = vmatpush1.msra.mxu0 0.0
    %837 = vmatprep.subr.mxu0 0.0
    %838 = vmatpush1.msra.mxu0 0.0
    %839 = vmatprep.subr.mxu0 0.0
    %840 = vmatpush1.msra.mxu0 0.0
    %841 = vmatprep.subr.mxu0 0.0
    %842 = vmatpush1.msra.mxu0 0.0
    %843 = vmatprep.subr.mxu0 0.0
    %844 = vmatpush1.msra.mxu0 0.0
    %845 = vmatprep.subr.mxu0 0.0
    %846 = vmatpush1.msra.mxu0 0.0
    %847 = vmatprep.subr.mxu0 0.0
    %848 = vmatpush1.msra.mxu0 0.0
    %849 = vmatprep.subr.mxu0 0.0
    %850 = vmatpush1.msra.mxu0 0.0
    %851 = vmatprep.subr.mxu0 0.0
    %852 = vmatpush1.msra.mxu0 0.0
    %853 = vmatprep.subr.mxu0 0.0
    %854 = vmatpush1.msra.mxu0 0.0
    %855 = vmatprep.subr.mxu0 0.0
    %856 = vmatpush1.msra.mxu0 0.0
    %857 = vmatprep.subr.mxu0 0.0
    %858 = vmatpush1.msra.mxu0 0.0
    %859 = vmatprep.subr.mxu0 0.0
    %860 = vmatpush1.msra.mxu0 0.0
    %861 = vmatprep.subr.mxu0 0.0
    %862 = vmatpush1.msra.mxu0 0.0
    %863 = vmatprep.subr.mxu0 0.0
    %864 = vmatpush1.msra.mxu0 0.0
    %865 = vmatprep.subr.mxu0 0.0
    %866 = vmatpush1.msra.mxu0 0.0
    %867 = vmatprep.subr.mxu0 0.0
    %868 = vmatpush1.msra.mxu0 0.0
    %869 = vmatprep.subr.mxu0 0.0
    %870 = vmatpush1.msra.mxu0 0.0
    %871 = vmatprep.subr.mxu0 0.0
    %872 = vmatpush1.msra.mxu0 0.0
    %873 = vmatprep.subr.mxu0 0.0
    %874 = vmatpush1.msra.mxu0 0.0
    %875 = vmatprep.subr.mxu0 0.0
    %876 = vmatpush1.msra.mxu0 0.0
    %877 = vmatprep.subr.mxu0 0.0
    %878 = vmatpush1.msra.mxu0 0.0
    %879 = vmatprep.subr.mxu0 0.0
    %880 = vmatpush1.msra.mxu0 0.0
    %881 = vmatprep.mubr.f32.mxu0 0.0
    %882 = vmatmul.mubr.f32.gmra.mrb[0].mxu0 %v578
    %v883 = vpop.f32.mrb[0].mxu0
    %v884 = vadd.f32 0.0, %v883
    %v885 = vpop.f32.mrb[0].mxu0
    %886 = vmatprep.mubr.f32.mxu0 0.0
    %887 = vmatmul.mubr.f32.gmra.mrb[0].mxu0 %v581
    %v888 = vpop.f32.mrb[0].mxu0
    %v889 = vadd.f32 0.0, %v888
    %v890 = vpop.f32.mrb[0].mxu0
    %891 = vmatprep.mubr.f32.mxu0 0.0
    %892 = vmatmul.mubr.f32.gmra.mrb[0].mxu0 %v584
    %v893 = vpop.f32.mrb[0].mxu0
    %v894 = vadd.f32 0.0, %v893
    %v895 = vpop.f32.mrb[0].mxu0
    %896 = vmatprep.mubr.f32.mxu0 0.0
    %897 = vmatmul.mubr.f32.gmra.mrb[0].mxu0 %v587
    %v898 = vpop.f32.mrb[0].mxu0
    %v899 = vadd.f32 0.0, %v898
    %v900 = vpop.f32.mrb[0].mxu0
    %901 = vmatprep.mubr.f32.mxu0 0.0
    %902 = vmatmul.mubr.f32.gmra.mrb[0].mxu0 %v590
    %v903 = vpop.f32.mrb[0].mxu0
    %v904 = vadd.f32 0.0, %v903
    %v905 = vpop.f32.mrb[0].mxu0
    %906 = vmatprep.mubr.f32.mxu0 0.0
    %907 = vmatmul.mubr.f32.gmra.mrb[0].mxu0 %v593
    %v908 = vpop.f32.mrb[0].mxu0
    %v909 = vadd.f32 0.0, %v908
    %v910 = vpop.f32.mrb[0].mxu0
    %911 = vmatprep.mubr.f32.mxu0 0.0
    %912 = vmatmul.mubr.f32.gmra.mrb[0].mxu0 %v596
    %v913 = vpop.f32.mrb[0].mxu0
    %v914 = vadd.f32 0.0, %v913
    %v915 = vpop.f32.mrb[0].mxu0
    %916 = vmatprep.mubr.f32.mxu0 0.0
    %917 = vmatmul.mubr.f32.gmra.mrb[0].mxu0 %v599
    %v918 = vpop.f32.mrb[0].mxu0
    %v919 = vadd.f32 0.0, %v918
    %v920 = vpop.f32.mrb[0].mxu0
    %921 = vmatprep.mubr.f32.mxu0 0.0
    %922 = vmatmul.mubr.f32.gmra.mrb[0].mxu0 %v602
    %v923 = vpop.f32.mrb[0].mxu0
    %v924 = vadd.f32 0.0, %v923
    %v925 = vpop.f32.mrb[0].mxu0
    %926 = vmatprep.mubr.f32.mxu0 0.0
    %927 = vmatmul.mubr.f32.gmra.mrb[0].mxu0 %v605
    %v928 = vpop.f32.mrb[0].mxu0
    %v929 = vadd.f32 0.0, %v928
    %v930 = vpop.f32.mrb[0].mxu0
    %931 = vmatprep.mubr.f32.mxu0 0.0
    %932 = vmatmul.mubr.f32.gmra.mrb[0].mxu0 %v608
    %v933 = vpop.f32.mrb[0].mxu0
    %v934 = vadd.f32 0.0, %v933
    %v935 = vpop.f32.mrb[0].mxu0
    %936 = vmatprep.mubr.f32.mxu0 0.0
    %937 = vmatmul.mubr.f32.gmra.mrb[0].mxu0 %v611
    %v938 = vpop.f32.mrb[0].mxu0
    %v939 = vadd.f32 0.0, %v938
    %v940 = vpop.f32.mrb[0].mxu0
    %941 = vmatprep.mubr.f32.mxu0 0.0
    %942 = vmatmul.mubr.f32.gmra.mrb[0].mxu0 %v614
    %v943 = vpop.f32.mrb[0].mxu0
    %v944 = vadd.f32 0.0, %v943
    %v945 = vpop.f32.mrb[0].mxu0
    %946 = vmatprep.mubr.f32.mxu0 0.0
    %947 = vmatmul.mubr.f32.gmra.mrb[0].mxu0 %v617
    %v948 = vpop.f32.mrb[0].mxu0
    %v949 = vadd.f32 0.0, %v948
    %v950 = vpop.f32.mrb[0].mxu0
    %951 = vmatprep.mubr.f32.mxu0 0.0
    %952 = vmatmul.mubr.f32.gmra.mrb[0].mxu0 %v620
    %v953 = vpop.f32.mrb[0].mxu0
    %v954 = vadd.f32 0.0, %v953
    %v955 = vpop.f32.mrb[0].mxu0
    %956 = vmatprep.mubr.f32.mxu0 0.0
    %957 = vmatmul.mubr.f32.gmra.mrb[0].mxu0 %v623
    %v958 = vpop.f32.mrb[0].mxu0
    %v959 = vadd.f32 0.0, %v958
    %v960 = vpop.f32.mrb[0].mxu0
    %961 = vmatprep.mubr.f32.mxu0 0.0
    %962 = vmatmul.mubr.f32.gmra.mrb[0].mxu0 %v626
    %v963 = vpop.f32.mrb[0].mxu0
    %v964 = vadd.f32 0.0, %v963
    %v965 = vpop.f32.mrb[0].mxu0
    %966 = vmatprep.mubr.f32.mxu0 0.0
    %967 = vmatmul.mubr.f32.gmra.mrb[0].mxu0 %v629
    %v968 = vpop.f32.mrb[0].mxu0
    %v969 = vadd.f32 0.0, %v968
    %v970 = vpop.f32.mrb[0].mxu0
    %971 = vmatprep.mubr.f32.mxu0 0.0
    %972 = vmatmul.mubr.f32.gmra.mrb[0].mxu0 %v632
    %v973 = vpop.f32.mrb[0].mxu0
    %v974 = vadd.f32 0.0, %v973
    %v975 = vpop.f32.mrb[0].mxu0
    %976 = vmatprep.mubr.f32.mxu0 0.0
    %977 = vmatmul.mubr.f32.gmra.mrb[0].mxu0 %v635
    %v978 = vpop.f32.mrb[0].mxu0
    %v979 = vadd.f32 0.0, %v978
    %v980 = vpop.f32.mrb[0].mxu0
    %981 = vmatprep.mubr.f32.mxu0 0.0
    %982 = vmatmul.mubr.f32.gmra.mrb[0].mxu0 %v638
    %v983 = vpop.f32.mrb[0].mxu0
    %v984 = vadd.f32 0.0, %v983
    %v985 = vpop.f32.mrb[0].mxu0
    %986 = vmatprep.mubr.f32.mxu0 0.0
    %987 = vmatmul.mubr.f32.gmra.mrb[0].mxu0 %v641
    %v988 = vpop.f32.mrb[0].mxu0
    %v989 = vadd.f32 0.0, %v988
    %v990 = vpop.f32.mrb[0].mxu0
    %991 = vmatprep.mubr.f32.mxu0 0.0
    %992 = vmatmul.mubr.f32.gmra.mrb[0].mxu0 %v644
    %v993 = vpop.f32.mrb[0].mxu0
    %v994 = vadd.f32 0.0, %v993
    %v995 = vpop.f32.mrb[0].mxu0
    %996 = vmatprep.mubr.f32.mxu0 0.0
    %997 = vmatmul.mubr.f32.gmra.mrb[0].mxu0 %v647
    %v998 = vpop.f32.mrb[0].mxu0
    %v999 = vadd.f32 0.0, %v998
    %v1000 = vpop.f32.mrb[0].mxu0
    %1001 = vmatprep.mubr.f32.mxu0 0.0
    %1002 = vmatmul.mubr.f32.gmra.mrb[0].mxu0 %v650
    %v1003 = vpop.f32.mrb[0].mxu0
    %v1004 = vadd.f32 0.0, %v1003
    %v1005 = vpop.f32.mrb[0].mxu0
    %1006 = vmatprep.mubr.f32.mxu0 0.0
    %1007 = vmatmul.mubr.f32.gmra.mrb[0].mxu0 %v653
    %v1008 = vpop.f32.mrb[0].mxu0
    %v1009 = vadd.f32 0.0, %v1008
    %v1010 = vpop.f32.mrb[0].mxu0
    %1011 = vmatprep.mubr.f32.mxu0 0.0
    %1012 = vmatmul.mubr.f32.gmra.mrb[0].mxu0 %v656
    %v1013 = vpop.f32.mrb[0].mxu0
    %v1014 = vadd.f32 0.0, %v1013
    %v1015 = vpop.f32.mrb[0].mxu0
    %1016 = vmatprep.mubr.f32.mxu0 0.0
    %1017 = vmatmul.mubr.f32.gmra.mrb[0].mxu0 %v659
    %v1018 = vpop.f32.mrb[0].mxu0
    %v1019 = vadd.f32 0.0, %v1018
    %v1020 = vpop.f32.mrb[0].mxu0
    %1021 = vmatprep.mubr.f32.mxu0 0.0
    %1022 = vmatmul.mubr.f32.gmra.mrb[0].mxu0 %v662
    %v1023 = vpop.f32.mrb[0].mxu0
    %v1024 = vadd.f32 0.0, %v1023
    %v1025 = vpop.f32.mrb[0].mxu0
    %1026 = vmatprep.mubr.f32.mxu0 0.0
    %1027 = vmatmul.mubr.f32.gmra.mrb[0].mxu0 %v665
    %v1028 = vpop.f32.mrb[0].mxu0
    %v1029 = vadd.f32 0.0, %v1028
    %v1030 = vpop.f32.mrb[0].mxu0
    %1031 = vmatprep.mubr.f32.mxu0 0.0
    %1032 = vmatmul.mubr.f32.gmra.mrb[0].mxu0 %v668
    %v1033 = vpop.f32.mrb[0].mxu0
    %v1034 = vadd.f32 0.0, %v1033
    %v1035 = vpop.f32.mrb[0].mxu0
    %1036 = vmatprep.mubr.f32.mxu0 0.0
    %1037 = vmatmul.mubr.f32.gmra.mrb[0].mxu0 %v671
    %v1038 = vpop.f32.mrb[0].mxu0
    %v1039 = vadd.f32 0.0, %v1038
    %v1040 = vpop.f32.mrb[0].mxu0
    %1041 = vmatprep.mubr.f32.mxu0 0.0
    %1042 = vmatmul.mubr.f32.gmra.mrb[0].mxu0 %v674
    %v1043 = vpop.f32.mrb[0].mxu0
    %v1044 = vadd.f32 0.0, %v1043
    %v1045 = vpop.f32.mrb[0].mxu0
    %1046 = vmatprep.mubr.f32.mxu0 0.0
    %1047 = vmatmul.mubr.f32.gmra.mrb[0].mxu0 %v677
    %v1048 = vpop.f32.mrb[0].mxu0
    %v1049 = vadd.f32 0.0, %v1048
    %v1050 = vpop.f32.mrb[0].mxu0
    %1051 = vmatprep.mubr.f32.mxu0 0.0
    %1052 = vmatmul.mubr.f32.gmra.mrb[0].mxu0 %v680
    %v1053 = vpop.f32.mrb[0].mxu0
    %v1054 = vadd.f32 0.0, %v1053
    %v1055 = vpop.f32.mrb[0].mxu0
    %1056 = vmatprep.mubr.f32.mxu0 0.0
    %1057 = vmatmul.mubr.f32.gmra.mrb[0].mxu0 %v683
    %v1058 = vpop.f32.mrb[0].mxu0
    %v1059 = vadd.f32 0.0, %v1058
    %v1060 = vpop.f32.mrb[0].mxu0
    %1061 = vmatprep.mubr.f32.mxu0 0.0
    %1062 = vmatmul.mubr.f32.gmra.mrb[0].mxu0 %v686
    %v1063 = vpop.f32.mrb[0].mxu0
    %v1064 = vadd.f32 0.0, %v1063
    %v1065 = vpop.f32.mrb[0].mxu0
    %1066 = vmatprep.mubr.f32.mxu0 0.0
    %1067 = vmatmul.mubr.f32.gmra.mrb[0].mxu0 %v689
    %v1068 = vpop.f32.mrb[0].mxu0
    %v1069 = vadd.f32 0.0, %v1068
    %v1070 = vpop.f32.mrb[0].mxu0
    %1071 = vmatprep.mubr.f32.mxu0 0.0
    %1072 = vmatmul.mubr.f32.gmra.mrb[0].mxu0 %v692
    %v1073 = vpop.f32.mrb[0].mxu0
    %v1074 = vadd.f32 0.0, %v1073
    %v1075 = vpop.f32.mrb[0].mxu0
    %1076 = vmatprep.mubr.f32.mxu0 0.0
    %1077 = vmatmul.mubr.f32.gmra.mrb[0].mxu0 %v695
    %v1078 = vpop.f32.mrb[0].mxu0
    %v1079 = vadd.f32 0.0, %v1078
    %v1080 = vpop.f32.mrb[0].mxu0
    %1081 = vmatprep.mubr.f32.mxu0 0.0
    %1082 = vmatmul.mubr.f32.gmra.mrb[0].mxu0 %v698
    %v1083 = vpop.f32.mrb[0].mxu0
    %v1084 = vadd.f32 0.0, %v1083
    %v1085 = vpop.f32.mrb[0].mxu0
    %1086 = vmatprep.mubr.f32.mxu0 0.0
    %1087 = vmatmul.mubr.f32.gmra.mrb[0].mxu0 %v701
    %v1088 = vpop.f32.mrb[0].mxu0
    %v1089 = vadd.f32 0.0, %v1088
    %v1090 = vpop.f32.mrb[0].mxu0
    %1091 = vmatprep.mubr.f32.mxu0 0.0
    %1092 = vmatmul.mubr.f32.gmra.mrb[0].mxu0 %v704
    %v1093 = vpop.f32.mrb[0].mxu0
    %v1094 = vadd.f32 0.0, %v1093
    %v1095 = vpop.f32.mrb[0].mxu0
    %1096 = vmatprep.mubr.f32.mxu0 0.0
    %1097 = vmatmul.mubr.f32.gmra.mrb[0].mxu0 %v707
    %v1098 = vpop.f32.mrb[0].mxu0
    %v1099 = vadd.f32 0.0, %v1098
    %v1100 = vpop.f32.mrb[0].mxu0
    %1101 = vmatprep.mubr.f32.mxu0 0.0
    %1102 = vmatmul.mubr.f32.gmra.mrb[0].mxu0 %v710
    %v1103 = vpop.f32.mrb[0].mxu0
    %v1104 = vadd.f32 0.0, %v1103
    %v1105 = vpop.f32.mrb[0].mxu0
    %1106 = vmatprep.mubr.f32.mxu0 0.0
    %1107 = vmatmul.mubr.f32.gmra.mrb[0].mxu0 %v713
    %v1108 = vpop.f32.mrb[0].mxu0
    %v1109 = vadd.f32 0.0, %v1108
    %v1110 = vpop.f32.mrb[0].mxu0
    %1111 = vmatprep.mubr.f32.mxu0 0.0
    %1112 = vmatmul.mubr.f32.gmra.mrb[0].mxu0 %v716
    %v1113 = vpop.f32.mrb[0].mxu0
    %v1114 = vadd.f32 0.0, %v1113
    %v1115 = vpop.f32.mrb[0].mxu0
    %1116 = vmatprep.mubr.f32.mxu0 0.0
    %1117 = vmatmul.mubr.f32.gmra.mrb[0].mxu0 %v719
    %v1118 = vpop.f32.mrb[0].mxu0
    %v1119 = vadd.f32 0.0, %v1118
    %v1120 = vpop.f32.mrb[0].mxu0
    %1121 = vmatprep.mubr.f32.mxu0 0.0
    %1122 = vmatmul.mubr.f32.gmra.mrb[0].mxu0 %v722
    %v1123 = vpop.f32.mrb[0].mxu0
    %v1124 = vadd.f32 0.0, %v1123
    %v1125 = vpop.f32.mrb[0].mxu0
    %1126 = vmatprep.mubr.f32.mxu0 0.0
    %1127 = vmatmul.mubr.f32.gmra.mrb[0].mxu0 %v725
    %v1128 = vpop.f32.mrb[0].mxu0
    %v1129 = vadd.f32 0.0, %v1128
    %v1130 = vpop.f32.mrb[0].mxu0
    %1131 = vmatprep.mubr.f32.mxu0 0.0
    %1132 = vmatmul.mubr.f32.gmra.mrb[0].mxu0 %v728
    %v1133 = vpop.f32.mrb[0].mxu0
    %v1134 = vadd.f32 0.0, %v1133
    %v1135 = vpop.f32.mrb[0].mxu0
    %1136 = vmatprep.mubr.f32.mxu0 0.0
    %1137 = vmatmul.mubr.f32.gmra.mrb[0].mxu0 %v731
    %v1138 = vpop.f32.mrb[0].mxu0
    %v1139 = vadd.f32 0.0, %v1138
    %v1140 = vpop.f32.mrb[0].mxu0
    %1141 = vmatprep.mubr.f32.mxu0 0.0
    %1142 = vmatmul.mubr.f32.gmra.mrb[0].mxu0 %v734
    %v1143 = vpop.f32.mrb[0].mxu0
    %v1144 = vadd.f32 0.0, %v1143
    %v1145 = vpop.f32.mrb[0].mxu0
    %1146 = vmatprep.mubr.f32.mxu0 0.0
    %1147 = vmatmul.mubr.f32.gmra.mrb[0].mxu0 %v737
    %v1148 = vpop.f32.mrb[0].mxu0
    %v1149 = vadd.f32 0.0, %v1148
    %v1150 = vpop.f32.mrb[0].mxu0
    %1151 = vmatprep.mubr.f32.mxu0 0.0
    %1152 = vmatmul.mubr.f32.gmra.mrb[0].mxu0 %v740
    %v1153 = vpop.f32.mrb[0].mxu0
    %v1154 = vadd.f32 0.0, %v1153
    %v1155 = vpop.f32.mrb[0].mxu0
    %1156 = vmatprep.mubr.f32.mxu0 0.0
    %1157 = vmatmul.mubr.f32.gmra.mrb[0].mxu0 %v743
    %v1158 = vpop.f32.mrb[0].mxu0
    %v1159 = vadd.f32 0.0, %v1158
    %v1160 = vpop.f32.mrb[0].mxu0
    %1161 = vmatprep.mubr.f32.mxu0 0.0
    %1162 = vmatmul.mubr.f32.gmra.mrb[0].mxu0 %v746
    %v1163 = vpop.f32.mrb[0].mxu0
    %v1164 = vadd.f32 0.0, %v1163
    %v1165 = vpop.f32.mrb[0].mxu0
    %1166 = vmatprep.mubr.f32.mxu0 0.0
    %1167 = vmatmul.mubr.f32.gmra.mrb[0].mxu0 %v749
    %v1168 = vpop.f32.mrb[0].mxu0
    %v1169 = vadd.f32 0.0, %v1168
    %v1170 = vpop.f32.mrb[0].mxu0
    %1171 = vmatprep.mubr.f32.mxu0 0.0
    %1172 = vmatmul.mubr.f32.gmra.mrb[0].mxu0 %v752
    %v1173 = vpop.f32.mrb[0].mxu0
    %v1174 = vadd.f32 0.0, %v1173
    %v1175 = vpop.f32.mrb[0].mxu0
    %1176 = vmatprep.mubr.f32.mxu0 0.0
    %1177 = vmatmul.mubr.f32.gmra.mrb[0].mxu0 %v755
    %v1178 = vpop.f32.mrb[0].mxu0
    %v1179 = vadd.f32 0.0, %v1178
    %v1180 = vpop.f32.mrb[0].mxu0
    %1181 = vmatprep.mubr.f32.mxu0 0.0
    %1182 = vmatmul.mubr.f32.gmra.mrb[0].mxu0 %v758
    %v1183 = vpop.f32.mrb[0].mxu0
    %v1184 = vadd.f32 0.0, %v1183
    %v1185 = vpop.f32.mrb[0].mxu0
    %1186 = vmatprep.mubr.f32.mxu0 0.0
    %1187 = vmatmul.mubr.f32.gmra.mrb[0].mxu0 %v761
    %v1188 = vpop.f32.mrb[0].mxu0
    %v1189 = vadd.f32 0.0, %v1188
    %v1190 = vpop.f32.mrb[0].mxu0
    %1191 = vmatprep.mubr.f32.mxu0 0.0
    %1192 = vmatmul.mubr.f32.gmra.mrb[0].mxu0 %v764
    %v1193 = vpop.f32.mrb[0].mxu0
    %v1194 = vadd.f32 0.0, %v1193
    %v1195 = vpop.f32.mrb[0].mxu0
    %1196 = vmatprep.mubr.f32.mxu0 0.0
    %1197 = vmatmul.mubr.f32.gmra.mrb[0].mxu0 %v767
    %v1198 = vpop.f32.mrb[0].mxu0
    %v1199 = vadd.f32 0.0, %v1198
    %v1200 = vpop.f32.mrb[0].mxu0
    %1201 = vmatprep.mubr.f32.mxu0 0.0
    %1202 = vmatmul.mubr.f32.gmra.mrb[0].mxu0 %v770
    %v1203 = vpop.f32.mrb[0].mxu0
    %v1204 = vadd.f32 0.0, %v1203
    %v1205 = vpop.f32.mrb[0].mxu0
    %1206 = vmatprep.mubr.f32.mxu0 0.0
    %1207 = vmatmul.mubr.f32.gmra.mrb[0].mxu0 %v773
    %v1208 = vpop.f32.mrb[0].mxu0
    %v1209 = vadd.f32 0.0, %v1208
    %v1210 = vpop.f32.mrb[0].mxu0
    %1211 = vmatprep.mubr.f32.mxu0 0.0
    %1212 = vmatmul.mubr.f32.gmra.mrb[0].mxu0 %v776
    %v1213 = vpop.f32.mrb[0].mxu0
    %v1214 = vadd.f32 0.0, %v1213
    %v1215 = vpop.f32.mrb[0].mxu0
    %1216 = vmatprep.mubr.f32.mxu0 0.0
    %1217 = vmatmul.mubr.f32.gmra.mrb[0].mxu0 %v779
    %v1218 = vpop.f32.mrb[0].mxu0
    %v1219 = vadd.f32 0.0, %v1218
    %v1220 = vpop.f32.mrb[0].mxu0
    %1221 = vmatprep.mubr.f32.mxu0 0.0
    %1222 = vmatmul.mubr.f32.gmra.mrb[0].mxu0 %v782
    %v1223 = vpop.f32.mrb[0].mxu0
    %v1224 = vadd.f32 0.0, %v1223
    %v1225 = vpop.f32.mrb[0].mxu0
    %1226 = vmatprep.mubr.f32.mxu0 0.0
    %1227 = vmatmul.mubr.f32.gmra.mrb[0].mxu0 %v785
    %v1228 = vpop.f32.mrb[0].mxu0
    %v1229 = vadd.f32 0.0, %v1228
    %v1230 = vpop.f32.mrb[0].mxu0
    %1231 = vmatprep.mubr.f32.mxu0 0.0
    %1232 = vmatmul.mubr.f32.gmra.mrb[0].mxu0 %v788
    %v1233 = vpop.f32.mrb[0].mxu0
    %v1234 = vadd.f32 0.0, %v1233
    %v1235 = vpop.f32.mrb[0].mxu0
    %1236 = vmatprep.mubr.f32.mxu0 0.0
    %1237 = vmatmul.mubr.f32.gmra.mrb[0].mxu0 %v791
    %v1238 = vpop.f32.mrb[0].mxu0
    %v1239 = vadd.f32 0.0, %v1238
    %v1240 = vpop.f32.mrb[0].mxu0
    %1241 = vmatprep.mubr.f32.mxu0 0.0
    %1242 = vmatmul.mubr.f32.gmra.mrb[0].mxu0 %v794
    %v1243 = vpop.f32.mrb[0].mxu0
    %v1244 = vadd.f32 0.0, %v1243
    %v1245 = vpop.f32.mrb[0].mxu0
    %1246 = vmatprep.mubr.f32.mxu0 0.0
    %1247 = vmatmul.mubr.f32.gmra.mrb[0].mxu0 %v797
    %v1248 = vpop.f32.mrb[0].mxu0
    %v1249 = vadd.f32 0.0, %v1248
    %v1250 = vpop.f32.mrb[0].mxu0
    %1251 = vmatprep.mubr.f32.mxu0 0.0
    %1252 = vmatmul.mubr.f32.gmra.mrb[0].mxu0 %v800
    %v1253 = vpop.f32.mrb[0].mxu0
    %v1254 = vadd.f32 0.0, %v1253
    %v1255 = vpop.f32.mrb[0].mxu0
    %1256 = vmatprep.mubr.f32.mxu0 0.0
    %1257 = vmatmul.mubr.f32.gmra.mrb[0].mxu0 %v803
    %v1258 = vpop.f32.mrb[0].mxu0
    %v1259 = vadd.f32 0.0, %v1258
    %v1260 = vpop.f32.mrb[0].mxu0
    %1261 = vmatprep.mubr.f32.mxu0 0.0
    %1262 = vmatmul.mubr.f32.gmra.mrb[0].mxu0 %v806
    %v1263 = vpop.f32.mrb[0].mxu0
    %v1264 = vadd.f32 0.0, %v1263
    %v1265 = vpop.f32.mrb[0].mxu0
    %1266 = vmatprep.mubr.f32.mxu0 0.0
    %1267 = vmatmul.mubr.f32.gmra.mrb[0].mxu0 %v809
    %v1268 = vpop.f32.mrb[0].mxu0
    %v1269 = vadd.f32 0.0, %v1268
    %v1270 = vpop.f32.mrb[0].mxu0
    %1271 = vmatprep.mubr.f32.mxu0 0.0
    %1272 = vmatmul.mubr.f32.gmra.mrb[0].mxu0 %v812
    %v1273 = vpop.f32.mrb[0].mxu0
    %v1274 = vadd.f32 0.0, %v1273
    %v1275 = vpop.f32.mrb[0].mxu0
    %1276 = vmatprep.mubr.f32.mxu0 0.0
    %1277 = vmatmul.mubr.f32.gmra.mrb[0].mxu0 %v815
    %v1278 = vpop.f32.mrb[0].mxu0
    %v1279 = vadd.f32 0.0, %v1278
    %v1280 = vpop.f32.mrb[0].mxu0
    %1281 = vdwg.mxu0
    %1282 = vst [vmem:[#allocation2] sm:$0xff] %v884
    %1283 = vst [vmem:[#allocation2 + $0x8] sm:$0xff] %v889
    %1284 = vst [vmem:[#allocation2 + $0x10] sm:$0xff] %v894
    %1285 = vst [vmem:[#allocation2 + $0x18] sm:$0xff] %v899
    %1286 = vst [vmem:[#allocation2 + $0x20] sm:$0xff] %v904
    %1287 = vst [vmem:[#allocation2 + $0x28] sm:$0xff] %v909
    %1288 = vst [vmem:[#allocation2 + $0x30] sm:$0xff] %v914
    %1289 = vst [vmem:[#allocation2 + $0x38] sm:$0xff] %v919
    %1290 = vst [vmem:[#allocation2 + $0x40] sm:$0xff] %v924
    %1291 = vst [vmem:[#allocation2 + $0x48] sm:$0xff] %v929
    %1292 = vst [vmem:[#allocation2 + $0x50] sm:$0xff] %v934
    %1293 = vst [vmem:[#allocation2 + $0x58] sm:$0xff] %v939
    %1294 = vst [vmem:[#allocation2 + $0x60] sm:$0xff] %v944
    %1295 = vst [vmem:[#allocation2 + $0x68] sm:$0xff] %v949
    %1296 = vst [vmem:[#allocation2 + $0x70] sm:$0xff] %v954
    %1297 = vst [vmem:[#allocation2 + $0x78] sm:$0xff] %v959
    %1298 = vst [vmem:[#allocation2 + $0x80] sm:$0xff] %v964
    %1299 = vst [vmem:[#allocation2 + $0x88] sm:$0xff] %v969
    %1300 = vst [vmem:[#allocation2 + $0x90] sm:$0xff] %v974
    %1301 = vst [vmem:[#allocation2 + $0x98] sm:$0xff] %v979
    %1302 = vst [vmem:[#allocation2 + $0xa0] sm:$0xff] %v984
    %1303 = vst [vmem:[#allocation2 + $0xa8] sm:$0xff] %v989
    %1304 = vst [vmem:[#allocation2 + $0xb0] sm:$0xff] %v994
    %1305 = vst [vmem:[#allocation2 + $0xb8] sm:$0xff] %v999
    %1306 = vst [vmem:[#allocation2 + $0xc0] sm:$0xff] %v1004
    %1307 = vst [vmem:[#allocation2 + $0xc8] sm:$0xff] %v1009
    %1308 = vst [vmem:[#allocation2 + $0xd0] sm:$0xff] %v1014
    %1309 = vst [vmem:[#allocation2 + $0xd8] sm:$0xff] %v1019
    %1310 = vst [vmem:[#allocation2 + $0xe0] sm:$0xff] %v1024
    %1311 = vst [vmem:[#allocation2 + $0xe8] sm:$0xff] %v1029
    %1312 = vst [vmem:[#allocation2 + $0xf0] sm:$0xff] %v1034
    %1313 = vst [vmem:[#allocation2 + $0xf8] sm:$0xff] %v1039
    %1314 = vst [vmem:[#allocation2 + $0x100] sm:$0xff] %v1044
    %1315 = vst [vmem:[#allocation2 + $0x108] sm:$0xff] %v1049
    %1316 = vst [vmem:[#allocation2 + $0x110] sm:$0xff] %v1054
    %1317 = vst [vmem:[#allocation2 + $0x118] sm:$0xff] %v1059
    %1318 = vst [vmem:[#allocation2 + $0x120] sm:$0xff] %v1064
    %1319 = vst [vmem:[#allocation2 + $0x128] sm:$0xff] %v1069
    %1320 = vst [vmem:[#allocation2 + $0x130] sm:$0xff] %v1074
    %1321 = vst [vmem:[#allocation2 + $0x138] sm:$0xff] %v1079
    %1322 = vst [vmem:[#allocation2 + $0x140] sm:$0xff] %v1084
    %1323 = vst [vmem:[#allocation2 + $0x148] sm:$0xff] %v1089
    %1324 = vst [vmem:[#allocation2 + $0x150] sm:$0xff] %v1094
    %1325 = vst [vmem:[#allocation2 + $0x158] sm:$0xff] %v1099
    %1326 = vst [vmem:[#allocation2 + $0x160] sm:$0xff] %v1104
    %1327 = vst [vmem:[#allocation2 + $0x168] sm:$0xff] %v1109
    %1328 = vst [vmem:[#allocation2 + $0x170] sm:$0xff] %v1114
    %1329 = vst [vmem:[#allocation2 + $0x178] sm:$0xff] %v1119
    %1330 = vst [vmem:[#allocation2 + $0x180] sm:$0xff] %v1124
    %1331 = vst [vmem:[#allocation2 + $0x188] sm:$0xff] %v1129
    %1332 = vst [vmem:[#allocation2 + $0x190] sm:$0xff] %v1134
    %1333 = vst [vmem:[#allocation2 + $0x198] sm:$0xff] %v1139
    %1334 = vst [vmem:[#allocation2 + $0x1a0] sm:$0xff] %v1144
    %1335 = vst [vmem:[#allocation2 + $0x1a8] sm:$0xff] %v1149
    %1336 = vst [vmem:[#allocation2 + $0x1b0] sm:$0xff] %v1154
    %1337 = vst [vmem:[#allocation2 + $0x1b8] sm:$0xff] %v1159
    %1338 = vst [vmem:[#allocation2 + $0x1c0] sm:$0xff] %v1164
    %1339 = vst [vmem:[#allocation2 + $0x1c8] sm:$0xff] %v1169
    %1340 = vst [vmem:[#allocation2 + $0x1d0] sm:$0xff] %v1174
    %1341 = vst [vmem:[#allocation2 + $0x1d8] sm:$0xff] %v1179
    %1342 = vst [vmem:[#allocation2 + $0x1e0] sm:$0xff] %v1184
    %1343 = vst [vmem:[#allocation2 + $0x1e8] sm:$0xff] %v1189
    %1344 = vst [vmem:[#allocation2 + $0x1f0] sm:$0xff] %v1194
    %1345 = vst [vmem:[#allocation2 + $0x1f8] sm:$0xff] %v1199
    %1346 = vst [vmem:[#allocation2 + $0x200] sm:$0xff] %v1204
    %1347 = vst [vmem:[#allocation2 + $0x208] sm:$0xff] %v1209
    %1348 = vst [vmem:[#allocation2 + $0x210] sm:$0xff] %v1214
    %1349 = vst [vmem:[#allocation2 + $0x218] sm:$0xff] %v1219
    %1350 = vst [vmem:[#allocation2 + $0x220] sm:$0xff] %v1224
    %1351 = vst [vmem:[#allocation2 + $0x228] sm:$0xff] %v1229
    %1352 = vst [vmem:[#allocation2 + $0x230] sm:$0xff] %v1234
    %1353 = vst [vmem:[#allocation2 + $0x238] sm:$0xff] %v1239
    %1354 = vst [vmem:[#allocation2 + $0x240] sm:$0xff] %v1244
    %1355 = vst [vmem:[#allocation2 + $0x248] sm:$0xff] %v1249
    %1356 = vst [vmem:[#allocation2 + $0x250] sm:$0xff] %v1254
    %1357 = vst [vmem:[#allocation2 + $0x258] sm:$0xff] %v1259
    %1358 = vst [vmem:[#allocation2 + $0x260] sm:$0xff] %v1264
    %1359 = vst [vmem:[#allocation2 + $0x268] sm:$0xff] %v1269
    %1360 = vst [vmem:[#allocation2 + $0x270] sm:$0xff] %v1274
    %1361 = vst [vmem:[#allocation2 + $0x278] sm:$0xff] %v1279
    // Predicated region
    $region10: #{tpu_custom_call.1} parent=1 // pred_check
      _
    $region11: #{tpu_custom_call.1} parent=1 // pred_check_branch
      %1363 = sbr.rel (0) target = $region13
    $region12: #{tpu_custom_call.1} parent=1 // pred_region
      %s1365 = ssub.s32 10240, 10240
      %1366 = vsyncadd [#allocation3], %s1365
      %s1367 = sshll.u32 [#allocation2], 4
      %s1368 = int_to_ptr.vmem [resolvable:$true] %s1367
      %1373 = dma.vmem_to_hbm [thread:$0]  %s1368, 10240, %s2, [#allocation3], 128, 128, 8
    $region13: #{tpu_custom_call.1} parent=1 // pred_fallthru
      _
    // Predicated region
    $region14: #{tpu_custom_call.1} parent=1 // pred_check
      _
    $region15: #{tpu_custom_call.1} parent=1 // pred_check_branch
      %1375 = sbr.rel (0) target = $region17
    $region16: #{tpu_custom_call.1} parent=1 // pred_region
      %1376 = dma.done [#allocation3], 10240
    $region17: #{tpu_custom_call.1} parent=1 // pred_fallthru
      _
    %1377 = vsyncpa [#allocation3], 1

// kernel: tpu_custom_call.1
$region0: #{tpu_custom_call.1}
  #allocation0 [shape = 'u32[]', space=smem, size = 0x4, offset = 0x4, fixed_abs, tag = 'smem constant byte address 0x4 - core index']
  #allocation1 [shape = 'u32[144,128]{1,0:T(1,128)}', space=vmem, size = 0x12000, scoped, tag = 'internal scratch']
  %s0 = inlined_call_operand.vmem [shape: s32[640,1], index: 0, kind: input, shape index: {}]
  %s1 = inlined_call_operand.vmem [shape: f32[16,128], index: 1, kind: input, shape index: {}]
  %s2 = inlined_call_operand.hbm [shape: f32[640,128], index: 2, kind: output, shape index: {}]
  %s3 = sld [smem:[#allocation0]]
  $region18: #{tpu_custom_call.1} parent=0
    _
  %s5 = ssub.s32 1, %s3
  %s6 = scalar_select 0, %s5, %s3
  $region1: #{tpu_custom_call.1} parent=0
    #allocation2 [shape = 'u8[327680]{0}', space=vmem, size = 0x50000, scoped, tag = 'output window, operand 0, single buffered']
    #allocation3 [shape = 's32[1]{0}', space=sflag, size = 0x4, scoped, tag = 'scoped memory for tpu_custom_call.1']
    %7 = vsyncpa [#allocation3], 0
    // Predicated region
    $region2: #{tpu_custom_call.1} parent=1 // pred_check
      _
    $region3: #{tpu_custom_call.1} parent=1 // pred_check_branch
      %9 = sbr.rel (0) target = $region5
    $region4: #{tpu_custom_call.1} parent=1 // pred_region
      _
    $region5: #{tpu_custom_call.1} parent=1 // pred_fallthru
      _
    // Predicated region
    $region6: #{tpu_custom_call.1} parent=1 // pred_check
      _
    $region7: #{tpu_custom_call.1} parent=1 // pred_check_branch
      %11 = sbr.rel (0) target = $region9
    $region8: #{tpu_custom_call.1} parent=1 // pred_region
      _
    $region9: #{tpu_custom_call.1} parent=1 // pred_fallthru
      _
    %v12 = vld [vmem:[%s0] sm:$0xff]
    %v13 = vld [vmem:[%s0 + $0x8] sm:$0xff]
    %v14 = vld [vmem:[%s0 + $0x10] sm:$0xff]
    %v15 = vld [vmem:[%s0 + $0x18] sm:$0xff]
    %v16 = vld [vmem:[%s0 + $0x20] sm:$0xff]
    %v17 = vld [vmem:[%s0 + $0x28] sm:$0xff]
    %v18 = vld [vmem:[%s0 + $0x30] sm:$0xff]
    %v19 = vld [vmem:[%s0 + $0x38] sm:$0xff]
    %v20 = vld [vmem:[%s0 + $0x40] sm:$0xff]
    %v21 = vld [vmem:[%s0 + $0x48] sm:$0xff]
    %v22 = vld [vmem:[%s0 + $0x50] sm:$0xff]
    %v23 = vld [vmem:[%s0 + $0x58] sm:$0xff]
    %v24 = vld [vmem:[%s0 + $0x60] sm:$0xff]
    %v25 = vld [vmem:[%s0 + $0x68] sm:$0xff]
    %v26 = vld [vmem:[%s0 + $0x70] sm:$0xff]
    %v27 = vld [vmem:[%s0 + $0x78] sm:$0xff]
    %v28 = vld [vmem:[%s0 + $0x80] sm:$0xff]
    %v29 = vld [vmem:[%s0 + $0x88] sm:$0xff]
    %v30 = vld [vmem:[%s0 + $0x90] sm:$0xff]
    %v31 = vld [vmem:[%s0 + $0x98] sm:$0xff]
    %v32 = vld [vmem:[%s0 + $0xa0] sm:$0xff]
    %v33 = vld [vmem:[%s0 + $0xa8] sm:$0xff]
    %v34 = vld [vmem:[%s0 + $0xb0] sm:$0xff]
    %v35 = vld [vmem:[%s0 + $0xb8] sm:$0xff]
    %v36 = vld [vmem:[%s0 + $0xc0] sm:$0xff]
    %v37 = vld [vmem:[%s0 + $0xc8] sm:$0xff]
    %v38 = vld [vmem:[%s0 + $0xd0] sm:$0xff]
    %v39 = vld [vmem:[%s0 + $0xd8] sm:$0xff]
    %v40 = vld [vmem:[%s0 + $0xe0] sm:$0xff]
    %v41 = vld [vmem:[%s0 + $0xe8] sm:$0xff]
    %v42 = vld [vmem:[%s0 + $0xf0] sm:$0xff]
    %v43 = vld [vmem:[%s0 + $0xf8] sm:$0xff]
    %v44 = vld [vmem:[%s0 + $0x100] sm:$0xff]
    %v45 = vld [vmem:[%s0 + $0x108] sm:$0xff]
    %v46 = vld [vmem:[%s0 + $0x110] sm:$0xff]
    %v47 = vld [vmem:[%s0 + $0x118] sm:$0xff]
    %v48 = vld [vmem:[%s0 + $0x120] sm:$0xff]
    %v49 = vld [vmem:[%s0 + $0x128] sm:$0xff]
    %v50 = vld [vmem:[%s0 + $0x130] sm:$0xff]
    %v51 = vld [vmem:[%s0 + $0x138] sm:$0xff]
    %v52 = vld [vmem:[%s0 + $0x140] sm:$0xff]
    %v53 = vld [vmem:[%s0 + $0x148] sm:$0xff]
    %v54 = vld [vmem:[%s0 + $0x150] sm:$0xff]
    %v55 = vld [vmem:[%s0 + $0x158] sm:$0xff]
    %v56 = vld [vmem:[%s0 + $0x160] sm:$0xff]
    %v57 = vld [vmem:[%s0 + $0x168] sm:$0xff]
    %v58 = vld [vmem:[%s0 + $0x170] sm:$0xff]
    %v59 = vld [vmem:[%s0 + $0x178] sm:$0xff]
    %v60 = vld [vmem:[%s0 + $0x180] sm:$0xff]
    %v61 = vld [vmem:[%s0 + $0x188] sm:$0xff]
    %v62 = vld [vmem:[%s0 + $0x190] sm:$0xff]
    %v63 = vld [vmem:[%s0 + $0x198] sm:$0xff]
    %v64 = vld [vmem:[%s0 + $0x1a0] sm:$0xff]
    %v65 = vld [vmem:[%s0 + $0x1a8] sm:$0xff]
    %v66 = vld [vmem:[%s0 + $0x1b0] sm:$0xff]
    %v67 = vld [vmem:[%s0 + $0x1b8] sm:$0xff]
    %v68 = vld [vmem:[%s0 + $0x1c0] sm:$0xff]
    %v69 = vld [vmem:[%s0 + $0x1c8] sm:$0xff]
    %v70 = vld [vmem:[%s0 + $0x1d0] sm:$0xff]
    %v71 = vld [vmem:[%s0 + $0x1d8] sm:$0xff]
    %v72 = vld [vmem:[%s0 + $0x1e0] sm:$0xff]
    %v73 = vld [vmem:[%s0 + $0x1e8] sm:$0xff]
    %v74 = vld [vmem:[%s0 + $0x1f0] sm:$0xff]
    %v75 = vld [vmem:[%s0 + $0x1f8] sm:$0xff]
    %v76 = vld [vmem:[%s0 + $0x200] sm:$0xff]
    %v77 = vld [vmem:[%s0 + $0x208] sm:$0xff]
    %v78 = vld [vmem:[%s0 + $0x210] sm:$0xff]
    %v79 = vld [vmem:[%s0 + $0x218] sm:$0xff]
    %v80 = vld [vmem:[%s0 + $0x220] sm:$0xff]
    %v81 = vld [vmem:[%s0 + $0x228] sm:$0xff]
    %v82 = vld [vmem:[%s0 + $0x230] sm:$0xff]
    %v83 = vld [vmem:[%s0 + $0x238] sm:$0xff]
    %v84 = vld [vmem:[%s0 + $0x240] sm:$0xff]
    %v85 = vld [vmem:[%s0 + $0x248] sm:$0xff]
    %v86 = vld [vmem:[%s0 + $0x250] sm:$0xff]
    %v87 = vld [vmem:[%s0 + $0x258] sm:$0xff]
    %v88 = vld [vmem:[%s0 + $0x260] sm:$0xff]
    %v89 = vld [vmem:[%s0 + $0x268] sm:$0xff]
    %v90 = vld [vmem:[%s0 + $0x270] sm:$0xff]
    %v91 = vld [vmem:[%s0 + $0x278] sm:$0xff]
    %v92 = vlaneseq
    %v93 = vand.u32 %v92, 127
    %94 = vset.pattern.permute.xlu0 0
    %95 = vperm.xlu0 %94, %v12
    %v96 = vpop.permute.xlu0 %95
    %97 = vset.pattern.permute.xlu0 0
    %98 = vperm.xlu0 %97, %v13
    %v99 = vpop.permute.xlu0 %98
    %100 = vset.pattern.permute.xlu0 0
    %101 = vperm.xlu0 %100, %v14
    %v102 = vpop.permute.xlu0 %101
    %103 = vset.pattern.permute.xlu0 0
    %104 = vperm.xlu0 %103, %v15
    %v105 = vpop.permute.xlu0 %104
    %106 = vset.pattern.permute.xlu0 0
    %107 = vperm.xlu0 %106, %v16
    %v108 = vpop.permute.xlu0 %107
    %109 = vset.pattern.permute.xlu0 0
    %110 = vperm.xlu0 %109, %v17
    %v111 = vpop.permute.xlu0 %110
    %112 = vset.pattern.permute.xlu0 0
    %113 = vperm.xlu0 %112, %v18
    %v114 = vpop.permute.xlu0 %113
    %115 = vset.pattern.permute.xlu0 0
    %116 = vperm.xlu0 %115, %v19
    %v117 = vpop.permute.xlu0 %116
    %118 = vset.pattern.permute.xlu0 0
    %119 = vperm.xlu0 %118, %v20
    %v120 = vpop.permute.xlu0 %119
    %121 = vset.pattern.permute.xlu0 0
    %122 = vperm.xlu0 %121, %v21
    %v123 = vpop.permute.xlu0 %122
    %124 = vset.pattern.permute.xlu0 0
    %125 = vperm.xlu0 %124, %v22
    %v126 = vpop.permute.xlu0 %125
    %127 = vset.pattern.permute.xlu0 0
    %128 = vperm.xlu0 %127, %v23
    %v129 = vpop.permute.xlu0 %128
    %130 = vset.pattern.permute.xlu0 0
    %131 = vperm.xlu0 %130, %v24
    %v132 = vpop.permute.xlu0 %131
    %133 = vset.pattern.permute.xlu0 0
    %134 = vperm.xlu0 %133, %v25
    %v135 = vpop.permute.xlu0 %134
    %136 = vset.pattern.permute.xlu0 0
    %137 = vperm.xlu0 %136, %v26
    %v138 = vpop.permute.xlu0 %137
    %139 = vset.pattern.permute.xlu0 0
    %140 = vperm.xlu0 %139, %v27
    %v141 = vpop.permute.xlu0 %140
    %142 = vset.pattern.permute.xlu0 0
    %143 = vperm.xlu0 %142, %v28
    %v144 = vpop.permute.xlu0 %143
    %145 = vset.pattern.permute.xlu0 0
    %146 = vperm.xlu0 %145, %v29
    %v147 = vpop.permute.xlu0 %146
    %148 = vset.pattern.permute.xlu0 0
    %149 = vperm.xlu0 %148, %v30
    %v150 = vpop.permute.xlu0 %149
    %151 = vset.pattern.permute.xlu0 0
    %152 = vperm.xlu0 %151, %v31
    %v153 = vpop.permute.xlu0 %152
    %154 = vset.pattern.permute.xlu0 0
    %155 = vperm.xlu0 %154, %v32
    %v156 = vpop.permute.xlu0 %155
    %157 = vset.pattern.permute.xlu0 0
    %158 = vperm.xlu0 %157, %v33
    %v159 = vpop.permute.xlu0 %158
    %160 = vset.pattern.permute.xlu0 0
    %161 = vperm.xlu0 %160, %v34
    %v162 = vpop.permute.xlu0 %161
    %163 = vset.pattern.permute.xlu0 0
    %164 = vperm.xlu0 %163, %v35
    %v165 = vpop.permute.xlu0 %164
    %166 = vset.pattern.permute.xlu0 0
    %167 = vperm.xlu0 %166, %v36
    %v168 = vpop.permute.xlu0 %167
    %169 = vset.pattern.permute.xlu0 0
    %170 = vperm.xlu0 %169, %v37
    %v171 = vpop.permute.xlu0 %170
    %172 = vset.pattern.permute.xlu0 0
    %173 = vperm.xlu0 %172, %v38
    %v174 = vpop.permute.xlu0 %173
    %175 = vset.pattern.permute.xlu0 0
    %176 = vperm.xlu0 %175, %v39
    %v177 = vpop.permute.xlu0 %176
    %178 = vset.pattern.permute.xlu0 0
    %179 = vperm.xlu0 %178, %v40
    %v180 = vpop.permute.xlu0 %179
    %181 = vset.pattern.permute.xlu0 0
    %182 = vperm.xlu0 %181, %v41
    %v183 = vpop.permute.xlu0 %182
    %184 = vset.pattern.permute.xlu0 0
    %185 = vperm.xlu0 %184, %v42
    %v186 = vpop.permute.xlu0 %185
    %187 = vset.pattern.permute.xlu0 0
    %188 = vperm.xlu0 %187, %v43
    %v189 = vpop.permute.xlu0 %188
    %190 = vset.pattern.permute.xlu0 0
    %191 = vperm.xlu0 %190, %v44
    %v192 = vpop.permute.xlu0 %191
    %193 = vset.pattern.permute.xlu0 0
    %194 = vperm.xlu0 %193, %v45
    %v195 = vpop.permute.xlu0 %194
    %196 = vset.pattern.permute.xlu0 0
    %197 = vperm.xlu0 %196, %v46
    %v198 = vpop.permute.xlu0 %197
    %199 = vset.pattern.permute.xlu0 0
    %200 = vperm.xlu0 %199, %v47
    %v201 = vpop.permute.xlu0 %200
    %202 = vset.pattern.permute.xlu0 0
    %203 = vperm.xlu0 %202, %v48
    %v204 = vpop.permute.xlu0 %203
    %205 = vset.pattern.permute.xlu0 0
    %206 = vperm.xlu0 %205, %v49
    %v207 = vpop.permute.xlu0 %206
    %208 = vset.pattern.permute.xlu0 0
    %209 = vperm.xlu0 %208, %v50
    %v210 = vpop.permute.xlu0 %209
    %211 = vset.pattern.permute.xlu0 0
    %212 = vperm.xlu0 %211, %v51
    %v213 = vpop.permute.xlu0 %212
    %214 = vset.pattern.permute.xlu0 0
    %215 = vperm.xlu0 %214, %v52
    %v216 = vpop.permute.xlu0 %215
    %217 = vset.pattern.permute.xlu0 0
    %218 = vperm.xlu0 %217, %v53
    %v219 = vpop.permute.xlu0 %218
    %220 = vset.pattern.permute.xlu0 0
    %221 = vperm.xlu0 %220, %v54
    %v222 = vpop.permute.xlu0 %221
    %223 = vset.pattern.permute.xlu0 0
    %224 = vperm.xlu0 %223, %v55
    %v225 = vpop.permute.xlu0 %224
    %226 = vset.pattern.permute.xlu0 0
    %227 = vperm.xlu0 %226, %v56
    %v228 = vpop.permute.xlu0 %227
    %229 = vset.pattern.permute.xlu0 0
    %230 = vperm.xlu0 %229, %v57
    %v231 = vpop.permute.xlu0 %230
    %232 = vset.pattern.permute.xlu0 0
    %233 = vperm.xlu0 %232, %v58
    %v234 = vpop.permute.xlu0 %233
    %235 = vset.pattern.permute.xlu0 0
    %236 = vperm.xlu0 %235, %v59
    %v237 = vpop.permute.xlu0 %236
    %238 = vset.pattern.permute.xlu0 0
    %239 = vperm.xlu0 %238, %v60
    %v240 = vpop.permute.xlu0 %239
    %241 = vset.pattern.permute.xlu0 0
    %242 = vperm.xlu0 %241, %v61
    %v243 = vpop.permute.xlu0 %242
    %244 = vset.pattern.permute.xlu0 0
    %245 = vperm.xlu0 %244, %v62
    %v246 = vpop.permute.xlu0 %245
    %247 = vset.pattern.permute.xlu0 0
    %248 = vperm.xlu0 %247, %v63
    %v249 = vpop.permute.xlu0 %248
    %250 = vset.pattern.permute.xlu0 0
    %251 = vperm.xlu0 %250, %v64
    %v252 = vpop.permute.xlu0 %251
    %253 = vset.pattern.permute.xlu0 0
    %254 = vperm.xlu0 %253, %v65
    %v255 = vpop.permute.xlu0 %254
    %256 = vset.pattern.permute.xlu0 0
    %257 = vperm.xlu0 %256, %v66
    %v258 = vpop.permute.xlu0 %257
    %259 = vset.pattern.permute.xlu0 0
    %260 = vperm.xlu0 %259, %v67
    %v261 = vpop.permute.xlu0 %260
    %262 = vset.pattern.permute.xlu0 0
    %263 = vperm.xlu0 %262, %v68
    %v264 = vpop.permute.xlu0 %263
    %265 = vset.pattern.permute.xlu0 0
    %266 = vperm.xlu0 %265, %v69
    %v267 = vpop.permute.xlu0 %266
    %268 = vset.pattern.permute.xlu0 0
    %269 = vperm.xlu0 %268, %v70
    %v270 = vpop.permute.xlu0 %269
    %271 = vset.pattern.permute.xlu0 0
    %272 = vperm.xlu0 %271, %v71
    %v273 = vpop.permute.xlu0 %272
    %274 = vset.pattern.permute.xlu0 0
    %275 = vperm.xlu0 %274, %v72
    %v276 = vpop.permute.xlu0 %275
    %277 = vset.pattern.permute.xlu0 0
    %278 = vperm.xlu0 %277, %v73
    %v279 = vpop.permute.xlu0 %278
    %280 = vset.pattern.permute.xlu0 0
    %281 = vperm.xlu0 %280, %v74
    %v282 = vpop.permute.xlu0 %281
    %283 = vset.pattern.permute.xlu0 0
    %284 = vperm.xlu0 %283, %v75
    %v285 = vpop.permute.xlu0 %284
    %286 = vset.pattern.permute.xlu0 0
    %287 = vperm.xlu0 %286, %v76
    %v288 = vpop.permute.xlu0 %287
    %289 = vset.pattern.permute.xlu0 0
    %290 = vperm.xlu0 %289, %v77
    %v291 = vpop.permute.xlu0 %290
    %292 = vset.pattern.permute.xlu0 0
    %293 = vperm.xlu0 %292, %v78
    %v294 = vpop.permute.xlu0 %293
    %295 = vset.pattern.permute.xlu0 0
    %296 = vperm.xlu0 %295, %v79
    %v297 = vpop.permute.xlu0 %296
    %298 = vset.pattern.permute.xlu0 0
    %299 = vperm.xlu0 %298, %v80
    %v300 = vpop.permute.xlu0 %299
    %301 = vset.pattern.permute.xlu0 0
    %302 = vperm.xlu0 %301, %v81
    %v303 = vpop.permute.xlu0 %302
    %304 = vset.pattern.permute.xlu0 0
    %305 = vperm.xlu0 %304, %v82
    %v306 = vpop.permute.xlu0 %305
    %307 = vset.pattern.permute.xlu0 0
    %308 = vperm.xlu0 %307, %v83
    %v309 = vpop.permute.xlu0 %308
    %310 = vset.pattern.permute.xlu0 0
    %311 = vperm.xlu0 %310, %v84
    %v312 = vpop.permute.xlu0 %311
    %313 = vset.pattern.permute.xlu0 0
    %314 = vperm.xlu0 %313, %v85
    %v315 = vpop.permute.xlu0 %314
    %316 = vset.pattern.permute.xlu0 0
    %317 = vperm.xlu0 %316, %v86
    %v318 = vpop.permute.xlu0 %317
    %319 = vset.pattern.permute.xlu0 0
    %320 = vperm.xlu0 %319, %v87
    %v321 = vpop.permute.xlu0 %320
    %322 = vset.pattern.permute.xlu0 0
    %323 = vperm.xlu0 %322, %v88
    %v324 = vpop.permute.xlu0 %323
    %325 = vset.pattern.permute.xlu0 0
    %326 = vperm.xlu0 %325, %v89
    %v327 = vpop.permute.xlu0 %326
    %328 = vset.pattern.permute.xlu0 0
    %329 = vperm.xlu0 %328, %v90
    %v330 = vpop.permute.xlu0 %329
    %331 = vset.pattern.permute.xlu0 0
    %332 = vperm.xlu0 %331, %v91
    %v333 = vpop.permute.xlu0 %332
    %vm334 = vcmp.eq.s32.totalorder %v96, %v93
    %vm335 = vcmp.eq.s32.totalorder %v99, %v93
    %vm336 = vcmp.eq.s32.totalorder %v102, %v93
    %vm337 = vcmp.eq.s32.totalorder %v105, %v93
    %vm338 = vcmp.eq.s32.totalorder %v108, %v93
    %vm339 = vcmp.eq.s32.totalorder %v111, %v93
    %vm340 = vcmp.eq.s32.totalorder %v114, %v93
    %vm341 = vcmp.eq.s32.totalorder %v117, %v93
    %vm342 = vcmp.eq.s32.totalorder %v120, %v93
    %vm343 = vcmp.eq.s32.totalorder %v123, %v93
    %vm344 = vcmp.eq.s32.totalorder %v126, %v93
    %vm345 = vcmp.eq.s32.totalorder %v129, %v93
    %vm346 = vcmp.eq.s32.totalorder %v132, %v93
    %vm347 = vcmp.eq.s32.totalorder %v135, %v93
    %vm348 = vcmp.eq.s32.totalorder %v138, %v93
    %vm349 = vcmp.eq.s32.totalorder %v141, %v93
    %vm350 = vcmp.eq.s32.totalorder %v144, %v93
    %vm351 = vcmp.eq.s32.totalorder %v147, %v93
    %vm352 = vcmp.eq.s32.totalorder %v150, %v93
    %vm353 = vcmp.eq.s32.totalorder %v153, %v93
    %vm354 = vcmp.eq.s32.totalorder %v156, %v93
    %vm355 = vcmp.eq.s32.totalorder %v159, %v93
    %vm356 = vcmp.eq.s32.totalorder %v162, %v93
    %vm357 = vcmp.eq.s32.totalorder %v165, %v93
    %vm358 = vcmp.eq.s32.totalorder %v168, %v93
    %vm359 = vcmp.eq.s32.totalorder %v171, %v93
    %vm360 = vcmp.eq.s32.totalorder %v174, %v93
    %vm361 = vcmp.eq.s32.totalorder %v177, %v93
    %vm362 = vcmp.eq.s32.totalorder %v180, %v93
    %vm363 = vcmp.eq.s32.totalorder %v183, %v93
    %vm364 = vcmp.eq.s32.totalorder %v186, %v93
    %vm365 = vcmp.eq.s32.totalorder %v189, %v93
    %vm366 = vcmp.eq.s32.totalorder %v192, %v93
    %vm367 = vcmp.eq.s32.totalorder %v195, %v93
    %vm368 = vcmp.eq.s32.totalorder %v198, %v93
    %vm369 = vcmp.eq.s32.totalorder %v201, %v93
    %vm370 = vcmp.eq.s32.totalorder %v204, %v93
    %vm371 = vcmp.eq.s32.totalorder %v207, %v93
    %vm372 = vcmp.eq.s32.totalorder %v210, %v93
    %vm373 = vcmp.eq.s32.totalorder %v213, %v93
    %vm374 = vcmp.eq.s32.totalorder %v216, %v93
    %vm375 = vcmp.eq.s32.totalorder %v219, %v93
    %vm376 = vcmp.eq.s32.totalorder %v222, %v93
    %vm377 = vcmp.eq.s32.totalorder %v225, %v93
    %vm378 = vcmp.eq.s32.totalorder %v228, %v93
    %vm379 = vcmp.eq.s32.totalorder %v231, %v93
    %vm380 = vcmp.eq.s32.totalorder %v234, %v93
    %vm381 = vcmp.eq.s32.totalorder %v237, %v93
    %vm382 = vcmp.eq.s32.totalorder %v240, %v93
    %vm383 = vcmp.eq.s32.totalorder %v243, %v93
    %vm384 = vcmp.eq.s32.totalorder %v246, %v93
    %vm385 = vcmp.eq.s32.totalorder %v249, %v93
    %vm386 = vcmp.eq.s32.totalorder %v252, %v93
    %vm387 = vcmp.eq.s32.totalorder %v255, %v93
    %vm388 = vcmp.eq.s32.totalorder %v258, %v93
    %vm389 = vcmp.eq.s32.totalorder %v261, %v93
    %vm390 = vcmp.eq.s32.totalorder %v264, %v93
    %vm391 = vcmp.eq.s32.totalorder %v267, %v93
    %vm392 = vcmp.eq.s32.totalorder %v270, %v93
    %vm393 = vcmp.eq.s32.totalorder %v273, %v93
    %vm394 = vcmp.eq.s32.totalorder %v276, %v93
    %vm395 = vcmp.eq.s32.totalorder %v279, %v93
    %vm396 = vcmp.eq.s32.totalorder %v282, %v93
    %vm397 = vcmp.eq.s32.totalorder %v285, %v93
    %vm398 = vcmp.eq.s32.totalorder %v288, %v93
    %vm399 = vcmp.eq.s32.totalorder %v291, %v93
    %vm400 = vcmp.eq.s32.totalorder %v294, %v93
    %vm401 = vcmp.eq.s32.totalorder %v297, %v93
    %vm402 = vcmp.eq.s32.totalorder %v300, %v93
    %vm403 = vcmp.eq.s32.totalorder %v303, %v93
    %vm404 = vcmp.eq.s32.totalorder %v306, %v93
    %vm405 = vcmp.eq.s32.totalorder %v309, %v93
    %vm406 = vcmp.eq.s32.totalorder %v312, %v93
    %vm407 = vcmp.eq.s32.totalorder %v315, %v93
    %vm408 = vcmp.eq.s32.totalorder %v318, %v93
    %vm409 = vcmp.eq.s32.totalorder %v321, %v93
    %vm410 = vcmp.eq.s32.totalorder %v324, %v93
    %vm411 = vcmp.eq.s32.totalorder %v327, %v93
    %vm412 = vcmp.eq.s32.totalorder %v330, %v93
    %vm413 = vcmp.eq.s32.totalorder %v333, %v93
    %v414 = vsel %vm334, 1, 0
    %v415 = vsel %vm335, 1, 0
    %v416 = vsel %vm336, 1, 0
    %v417 = vsel %vm337, 1, 0
    %v418 = vsel %vm338, 1, 0
    %v419 = vsel %vm339, 1, 0
    %v420 = vsel %vm340, 1, 0
    %v421 = vsel %vm341, 1, 0
    %v422 = vsel %vm342, 1, 0
    %v423 = vsel %vm343, 1, 0
    %v424 = vsel %vm344, 1, 0
    %v425 = vsel %vm345, 1, 0
    %v426 = vsel %vm346, 1, 0
    %v427 = vsel %vm347, 1, 0
    %v428 = vsel %vm348, 1, 0
    %v429 = vsel %vm349, 1, 0
    %v430 = vsel %vm350, 1, 0
    %v431 = vsel %vm351, 1, 0
    %v432 = vsel %vm352, 1, 0
    %v433 = vsel %vm353, 1, 0
    %v434 = vsel %vm354, 1, 0
    %v435 = vsel %vm355, 1, 0
    %v436 = vsel %vm356, 1, 0
    %v437 = vsel %vm357, 1, 0
    %v438 = vsel %vm358, 1, 0
    %v439 = vsel %vm359, 1, 0
    %v440 = vsel %vm360, 1, 0
    %v441 = vsel %vm361, 1, 0
    %v442 = vsel %vm362, 1, 0
    %v443 = vsel %vm363, 1, 0
    %v444 = vsel %vm364, 1, 0
    %v445 = vsel %vm365, 1, 0
    %v446 = vsel %vm366, 1, 0
    %v447 = vsel %vm367, 1, 0
    %v448 = vsel %vm368, 1, 0
    %v449 = vsel %vm369, 1, 0
    %v450 = vsel %vm370, 1, 0
    %v451 = vsel %vm371, 1, 0
    %v452 = vsel %vm372, 1, 0
    %v453 = vsel %vm373, 1, 0
    %v454 = vsel %vm374, 1, 0
    %v455 = vsel %vm375, 1, 0
    %v456 = vsel %vm376, 1, 0
    %v457 = vsel %vm377, 1, 0
    %v458 = vsel %vm378, 1, 0
    %v459 = vsel %vm379, 1, 0
    %v460 = vsel %vm380, 1, 0
    %v461 = vsel %vm381, 1, 0
    %v462 = vsel %vm382, 1, 0
    %v463 = vsel %vm383, 1, 0
    %v464 = vsel %vm384, 1, 0
    %v465 = vsel %vm385, 1, 0
    %v466 = vsel %vm386, 1, 0
    %v467 = vsel %vm387, 1, 0
    %v468 = vsel %vm388, 1, 0
    %v469 = vsel %vm389, 1, 0
    %v470 = vsel %vm390, 1, 0
    %v471 = vsel %vm391, 1, 0
    %v472 = vsel %vm392, 1, 0
    %v473 = vsel %vm393, 1, 0
    %v474 = vsel %vm394, 1, 0
    %v475 = vsel %vm395, 1, 0
    %v476 = vsel %vm396, 1, 0
    %v477 = vsel %vm397, 1, 0
    %v478 = vsel %vm398, 1, 0
    %v479 = vsel %vm399, 1, 0
    %v480 = vsel %vm400, 1, 0
    %v481 = vsel %vm401, 1, 0
    %v482 = vsel %vm402, 1, 0
    %v483 = vsel %vm403, 1, 0
    %v484 = vsel %vm404, 1, 0
    %v485 = vsel %vm405, 1, 0
    %v486 = vsel %vm406, 1, 0
    %v487 = vsel %vm407, 1, 0
    %v488 = vsel %vm408, 1, 0
    %v489 = vsel %vm409, 1, 0
    %v490 = vsel %vm410, 1, 0
    %v491 = vsel %vm411, 1, 0
    %v492 = vsel %vm412, 1, 0
    %v493 = vsel %vm413, 1, 0
    %v494 = vcvt.s32.f32 %v414
    %v495 = vcvt.s32.f32 %v415
    %v496 = vcvt.s32.f32 %v416
    %v497 = vcvt.s32.f32 %v417
    %v498 = vcvt.s32.f32 %v418
    %v499 = vcvt.s32.f32 %v419
    %v500 = vcvt.s32.f32 %v420
    %v501 = vcvt.s32.f32 %v421
    %v502 = vcvt.s32.f32 %v422
    %v503 = vcvt.s32.f32 %v423
    %v504 = vcvt.s32.f32 %v424
    %v505 = vcvt.s32.f32 %v425
    %v506 = vcvt.s32.f32 %v426
    %v507 = vcvt.s32.f32 %v427
    %v508 = vcvt.s32.f32 %v428
    %v509 = vcvt.s32.f32 %v429
    %v510 = vcvt.s32.f32 %v430
    %v511 = vcvt.s32.f32 %v431
    %v512 = vcvt.s32.f32 %v432
    %v513 = vcvt.s32.f32 %v433
    %v514 = vcvt.s32.f32 %v434
    %v515 = vcvt.s32.f32 %v435
    %v516 = vcvt.s32.f32 %v436
    %v517 = vcvt.s32.f32 %v437
    %v518 = vcvt.s32.f32 %v438
    %v519 = vcvt.s32.f32 %v439
    %v520 = vcvt.s32.f32 %v440
    %v521 = vcvt.s32.f32 %v441
    %v522 = vcvt.s32.f32 %v442
    %v523 = vcvt.s32.f32 %v443
    %v524 = vcvt.s32.f32 %v444
    %v525 = vcvt.s32.f32 %v445
    %v526 = vcvt.s32.f32 %v446
    %v527 = vcvt.s32.f32 %v447
    %v528 = vcvt.s32.f32 %v448
    %v529 = vcvt.s32.f32 %v449
    %v530 = vcvt.s32.f32 %v450
    %v531 = vcvt.s32.f32 %v451
    %v532 = vcvt.s32.f32 %v452
    %v533 = vcvt.s32.f32 %v453
    %v534 = vcvt.s32.f32 %v454
    %v535 = vcvt.s32.f32 %v455
    %v536 = vcvt.s32.f32 %v456
    %v537 = vcvt.s32.f32 %v457
    %v538 = vcvt.s32.f32 %v458
    %v539 = vcvt.s32.f32 %v459
    %v540 = vcvt.s32.f32 %v460
    %v541 = vcvt.s32.f32 %v461
    %v542 = vcvt.s32.f32 %v462
    %v543 = vcvt.s32.f32 %v463
    %v544 = vcvt.s32.f32 %v464
    %v545 = vcvt.s32.f32 %v465
    %v546 = vcvt.s32.f32 %v466
    %v547 = vcvt.s32.f32 %v467
    %v548 = vcvt.s32.f32 %v468
    %v549 = vcvt.s32.f32 %v469
    %v550 = vcvt.s32.f32 %v470
    %v551 = vcvt.s32.f32 %v471
    %v552 = vcvt.s32.f32 %v472
    %v553 = vcvt.s32.f32 %v473
    %v554 = vcvt.s32.f32 %v474
    %v555 = vcvt.s32.f32 %v475
    %v556 = vcvt.s32.f32 %v476
    %v557 = vcvt.s32.f32 %v477
    %v558 = vcvt.s32.f32 %v478
    %v559 = vcvt.s32.f32 %v479
    %v560 = vcvt.s32.f32 %v480
    %v561 = vcvt.s32.f32 %v481
    %v562 = vcvt.s32.f32 %v482
    %v563 = vcvt.s32.f32 %v483
    %v564 = vcvt.s32.f32 %v484
    %v565 = vcvt.s32.f32 %v485
    %v566 = vcvt.s32.f32 %v486
    %v567 = vcvt.s32.f32 %v487
    %v568 = vcvt.s32.f32 %v488
    %v569 = vcvt.s32.f32 %v489
    %v570 = vcvt.s32.f32 %v490
    %v571 = vcvt.s32.f32 %v491
    %v572 = vcvt.s32.f32 %v492
    %v573 = vcvt.s32.f32 %v493
    %v574 = vld [vmem:[%s1] sm:$0xff]
    %v575 = vld [vmem:[%s1 + $0x8] sm:$0xff]
    %vm576 = vcmask 130048
    %v578 = vsel %vm576, %v494, 0
    %v581 = vsel %vm576, %v495, 0
    %v584 = vsel %vm576, %v496, 0
    %v587 = vsel %vm576, %v497, 0
    %v590 = vsel %vm576, %v498, 0
    %v593 = vsel %vm576, %v499, 0
    %v596 = vsel %vm576, %v500, 0
    %v599 = vsel %vm576, %v501, 0
    %v602 = vsel %vm576, %v502, 0
    %v605 = vsel %vm576, %v503, 0
    %v608 = vsel %vm576, %v504, 0
    %v611 = vsel %vm576, %v505, 0
    %v614 = vsel %vm576, %v506, 0
    %v617 = vsel %vm576, %v507, 0
    %v620 = vsel %vm576, %v508, 0
    %v623 = vsel %vm576, %v509, 0
    %v626 = vsel %vm576, %v510, 0
    %v629 = vsel %vm576, %v511, 0
    %v632 = vsel %vm576, %v512, 0
    %v635 = vsel %vm576, %v513, 0
    %v638 = vsel %vm576, %v514, 0
    %v641 = vsel %vm576, %v515, 0
    %v644 = vsel %vm576, %v516, 0
    %v647 = vsel %vm576, %v517, 0
    %v650 = vsel %vm576, %v518, 0
    %v653 = vsel %vm576, %v519, 0
    %v656 = vsel %vm576, %v520, 0
    %v659 = vsel %vm576, %v521, 0
    %v662 = vsel %vm576, %v522, 0
    %v665 = vsel %vm576, %v523, 0
    %v668 = vsel %vm576, %v524, 0
    %v671 = vsel %vm576, %v525, 0
    %v674 = vsel %vm576, %v526, 0
    %v677 = vsel %vm576, %v527, 0
    %v680 = vsel %vm576, %v528, 0
    %v683 = vsel %vm576, %v529, 0
    %v686 = vsel %vm576, %v530, 0
    %v689 = vsel %vm576, %v531, 0
    %v692 = vsel %vm576, %v532, 0
    %v695 = vsel %vm576, %v533, 0
    %v698 = vsel %vm576, %v534, 0
    %v701 = vsel %vm576, %v535, 0
    %v704 = vsel %vm576, %v536, 0
    %v707 = vsel %vm576, %v537, 0
    %v710 = vsel %vm576, %v538, 0
    %v713 = vsel %vm576, %v539, 0
    %v716 = vsel %vm576, %v540, 0
    %v719 = vsel %vm576, %v541, 0
    %v722 = vsel %vm576, %v542, 0
    %v725 = vsel %vm576, %v543, 0
    %v728 = vsel %vm576, %v544, 0
    %v731 = vsel %vm576, %v545, 0
    %v734 = vsel %vm576, %v546, 0
    %v737 = vsel %vm576, %v547, 0
    %v740 = vsel %vm576, %v548, 0
    %v743 = vsel %vm576, %v549, 0
    %v746 = vsel %vm576, %v550, 0
    %v749 = vsel %vm576, %v551, 0
    %v752 = vsel %vm576, %v552, 0
    %v755 = vsel %vm576, %v553, 0
    %v758 = vsel %vm576, %v554, 0
    %v761 = vsel %vm576, %v555, 0
    %v764 = vsel %vm576, %v556, 0
    %v767 = vsel %vm576, %v557, 0
    %v770 = vsel %vm576, %v558, 0
    %v773 = vsel %vm576, %v559, 0
    %v776 = vsel %vm576, %v560, 0
    %v779 = vsel %vm576, %v561, 0
    %v782 = vsel %vm576, %v562, 0
    %v785 = vsel %vm576, %v563, 0
    %v788 = vsel %vm576, %v564, 0
    %v791 = vsel %vm576, %v565, 0
    %v794 = vsel %vm576, %v566, 0
    %v797 = vsel %vm576, %v567, 0
    %v800 = vsel %vm576, %v568, 0
    %v803 = vsel %vm576, %v569, 0
    %v806 = vsel %vm576, %v570, 0
    %v809 = vsel %vm576, %v571, 0
    %v812 = vsel %vm576, %v572, 0
    %v815 = vsel %vm576, %v573, 0
    %817 = vmatprep.subr.mxu0 0.0
    %818 = vmatpush1.msra.mxu0 %v574
    %819 = vmatprep.subr.mxu0 0.0
    %820 = vmatpush1.msra.mxu0 %v575
    %821 = vmatprep.subr.mxu0 0.0
    %822 = vmatpush1.msra.mxu0 0.0
    %823 = vmatprep.subr.mxu0 0.0
    %824 = vmatpush1.msra.mxu0 0.0
    %825 = vmatprep.subr.mxu0 0.0
    %826 = vmatpush1.msra.mxu0 0.0
    %827 = vmatprep.subr.mxu0 0.0
    %828 = vmatpush1.msra.mxu0 0.0
    %829 = vmatprep.subr.mxu0 0.0
    %830 = vmatpush1.msra.mxu0 0.0
    %831 = vmatprep.subr.mxu0 0.0
    %832 = vmatpush1.msra.mxu0 0.0
    %833 = vmatprep.subr.mxu0 0.0
    %834 = vmatpush1.msra.mxu0 0.0
    %835 = vmatprep.subr.mxu0 0.0
    %836 = vmatpush1.msra.mxu0 0.0
    %837 = vmatprep.subr.mxu0 0.0
    %838 = vmatpush1.msra.mxu0 0.0
    %839 = vmatprep.subr.mxu0 0.0
    %840 = vmatpush1.msra.mxu0 0.0
    %841 = vmatprep.subr.mxu0 0.0
    %842 = vmatpush1.msra.mxu0 0.0
    %843 = vmatprep.subr.mxu0 0.0
    %844 = vmatpush1.msra.mxu0 0.0
    %845 = vmatprep.subr.mxu0 0.0
    %846 = vmatpush1.msra.mxu0 0.0
    %847 = vmatprep.subr.mxu0 0.0
    %848 = vmatpush1.msra.mxu0 0.0
    %849 = vmatprep.subr.mxu0 0.0
    %850 = vmatpush1.msra.mxu0 0.0
    %851 = vmatprep.subr.mxu0 0.0
    %852 = vmatpush1.msra.mxu0 0.0
    %853 = vmatprep.subr.mxu0 0.0
    %854 = vmatpush1.msra.mxu0 0.0
    %855 = vmatprep.subr.mxu0 0.0
    %856 = vmatpush1.msra.mxu0 0.0
    %857 = vmatprep.subr.mxu0 0.0
    %858 = vmatpush1.msra.mxu0 0.0
    %859 = vmatprep.subr.mxu0 0.0
    %860 = vmatpush1.msra.mxu0 0.0
    %861 = vmatprep.subr.mxu0 0.0
    %862 = vmatpush1.msra.mxu0 0.0
    %863 = vmatprep.subr.mxu0 0.0
    %864 = vmatpush1.msra.mxu0 0.0
    %865 = vmatprep.subr.mxu0 0.0
    %866 = vmatpush1.msra.mxu0 0.0
    %867 = vmatprep.subr.mxu0 0.0
    %868 = vmatpush1.msra.mxu0 0.0
    %869 = vmatprep.subr.mxu0 0.0
    %870 = vmatpush1.msra.mxu0 0.0
    %871 = vmatprep.subr.mxu0 0.0
    %872 = vmatpush1.msra.mxu0 0.0
    %873 = vmatprep.subr.mxu0 0.0
    %874 = vmatpush1.msra.mxu0 0.0
    %875 = vmatprep.subr.mxu0 0.0
    %876 = vmatpush1.msra.mxu0 0.0
    %877 = vmatprep.subr.mxu0 0.0
    %878 = vmatpush1.msra.mxu0 0.0
    %879 = vmatprep.subr.mxu0 0.0
    %880 = vmatpush1.msra.mxu0 0.0
    %881 = vmatprep.mubr.f32.mxu0 0.0
    %882 = vmatmul.mubr.f32.gmra.mrb[0].mxu0 %v578
    %v883 = vpop.f32.mrb[0].mxu0
    %v884 = vadd.f32 0.0, %v883
    %v885 = vpop.f32.mrb[0].mxu0
    %886 = vmatprep.mubr.f32.mxu0 0.0
    %887 = vmatmul.mubr.f32.gmra.mrb[0].mxu0 %v581
    %v888 = vpop.f32.mrb[0].mxu0
    %v889 = vadd.f32 0.0, %v888
    %v890 = vpop.f32.mrb[0].mxu0
    %891 = vmatprep.mubr.f32.mxu0 0.0
    %892 = vmatmul.mubr.f32.gmra.mrb[0].mxu0 %v584
    %v893 = vpop.f32.mrb[0].mxu0
    %v894 = vadd.f32 0.0, %v893
    %v895 = vpop.f32.mrb[0].mxu0
    %896 = vmatprep.mubr.f32.mxu0 0.0
    %897 = vmatmul.mubr.f32.gmra.mrb[0].mxu0 %v587
    %v898 = vpop.f32.mrb[0].mxu0
    %v899 = vadd.f32 0.0, %v898
    %v900 = vpop.f32.mrb[0].mxu0
    %901 = vmatprep.mubr.f32.mxu0 0.0
    %902 = vmatmul.mubr.f32.gmra.mrb[0].mxu0 %v590
    %v903 = vpop.f32.mrb[0].mxu0
    %v904 = vadd.f32 0.0, %v903
    %v905 = vpop.f32.mrb[0].mxu0
    %906 = vmatprep.mubr.f32.mxu0 0.0
    %907 = vmatmul.mubr.f32.gmra.mrb[0].mxu0 %v593
    %v908 = vpop.f32.mrb[0].mxu0
    %v909 = vadd.f32 0.0, %v908
    %v910 = vpop.f32.mrb[0].mxu0
    %911 = vmatprep.mubr.f32.mxu0 0.0
    %912 = vmatmul.mubr.f32.gmra.mrb[0].mxu0 %v596
    %v913 = vpop.f32.mrb[0].mxu0
    %v914 = vadd.f32 0.0, %v913
    %v915 = vpop.f32.mrb[0].mxu0
    %916 = vmatprep.mubr.f32.mxu0 0.0
    %917 = vmatmul.mubr.f32.gmra.mrb[0].mxu0 %v599
    %v918 = vpop.f32.mrb[0].mxu0
    %v919 = vadd.f32 0.0, %v918
    %v920 = vpop.f32.mrb[0].mxu0
    %921 = vmatprep.mubr.f32.mxu0 0.0
    %922 = vmatmul.mubr.f32.gmra.mrb[0].mxu0 %v602
    %v923 = vpop.f32.mrb[0].mxu0
    %v924 = vadd.f32 0.0, %v923
    %v925 = vpop.f32.mrb[0].mxu0
    %926 = vmatprep.mubr.f32.mxu0 0.0
    %927 = vmatmul.mubr.f32.gmra.mrb[0].mxu0 %v605
    %v928 = vpop.f32.mrb[0].mxu0
    %v929 = vadd.f32 0.0, %v928
    %v930 = vpop.f32.mrb[0].mxu0
    %931 = vmatprep.mubr.f32.mxu0 0.0
    %932 = vmatmul.mubr.f32.gmra.mrb[0].mxu0 %v608
    %v933 = vpop.f32.mrb[0].mxu0
    %v934 = vadd.f32 0.0, %v933
    %v935 = vpop.f32.mrb[0].mxu0
    %936 = vmatprep.mubr.f32.mxu0 0.0
    %937 = vmatmul.mubr.f32.gmra.mrb[0].mxu0 %v611
    %v938 = vpop.f32.mrb[0].mxu0
    %v939 = vadd.f32 0.0, %v938
    %v940 = vpop.f32.mrb[0].mxu0
    %941 = vmatprep.mubr.f32.mxu0 0.0
    %942 = vmatmul.mubr.f32.gmra.mrb[0].mxu0 %v614
    %v943 = vpop.f32.mrb[0].mxu0
    %v944 = vadd.f32 0.0, %v943
    %v945 = vpop.f32.mrb[0].mxu0
    %946 = vmatprep.mubr.f32.mxu0 0.0
    %947 = vmatmul.mubr.f32.gmra.mrb[0].mxu0 %v617
    %v948 = vpop.f32.mrb[0].mxu0
    %v949 = vadd.f32 0.0, %v948
    %v950 = vpop.f32.mrb[0].mxu0
    %951 = vmatprep.mubr.f32.mxu0 0.0
    %952 = vmatmul.mubr.f32.gmra.mrb[0].mxu0 %v620
    %v953 = vpop.f32.mrb[0].mxu0
    %v954 = vadd.f32 0.0, %v953
    %v955 = vpop.f32.mrb[0].mxu0
    %956 = vmatprep.mubr.f32.mxu0 0.0
    %957 = vmatmul.mubr.f32.gmra.mrb[0].mxu0 %v623
    %v958 = vpop.f32.mrb[0].mxu0
    %v959 = vadd.f32 0.0, %v958
    %v960 = vpop.f32.mrb[0].mxu0
    %961 = vmatprep.mubr.f32.mxu0 0.0
    %962 = vmatmul.mubr.f32.gmra.mrb[0].mxu0 %v626
    %v963 = vpop.f32.mrb[0].mxu0
    %v964 = vadd.f32 0.0, %v963
    %v965 = vpop.f32.mrb[0].mxu0
    %966 = vmatprep.mubr.f32.mxu0 0.0
    %967 = vmatmul.mubr.f32.gmra.mrb[0].mxu0 %v629
    %v968 = vpop.f32.mrb[0].mxu0
    %v969 = vadd.f32 0.0, %v968
    %v970 = vpop.f32.mrb[0].mxu0
    %971 = vmatprep.mubr.f32.mxu0 0.0
    %972 = vmatmul.mubr.f32.gmra.mrb[0].mxu0 %v632
    %v973 = vpop.f32.mrb[0].mxu0
    %v974 = vadd.f32 0.0, %v973
    %v975 = vpop.f32.mrb[0].mxu0
    %976 = vmatprep.mubr.f32.mxu0 0.0
    %977 = vmatmul.mubr.f32.gmra.mrb[0].mxu0 %v635
    %v978 = vpop.f32.mrb[0].mxu0
    %v979 = vadd.f32 0.0, %v978
    %v980 = vpop.f32.mrb[0].mxu0
    %981 = vmatprep.mubr.f32.mxu0 0.0
    %982 = vmatmul.mubr.f32.gmra.mrb[0].mxu0 %v638
    %v983 = vpop.f32.mrb[0].mxu0
    %v984 = vadd.f32 0.0, %v983
    %v985 = vpop.f32.mrb[0].mxu0
    %986 = vmatprep.mubr.f32.mxu0 0.0
    %987 = vmatmul.mubr.f32.gmra.mrb[0].mxu0 %v641
    %v988 = vpop.f32.mrb[0].mxu0
    %v989 = vadd.f32 0.0, %v988
    %v990 = vpop.f32.mrb[0].mxu0
    %991 = vmatprep.mubr.f32.mxu0 0.0
    %992 = vmatmul.mubr.f32.gmra.mrb[0].mxu0 %v644
    %v993 = vpop.f32.mrb[0].mxu0
    %v994 = vadd.f32 0.0, %v993
    %v995 = vpop.f32.mrb[0].mxu0
    %996 = vmatprep.mubr.f32.mxu0 0.0
    %997 = vmatmul.mubr.f32.gmra.mrb[0].mxu0 %v647
    %v998 = vpop.f32.mrb[0].mxu0
    %v999 = vadd.f32 0.0, %v998
    %v1000 = vpop.f32.mrb[0].mxu0
    %1001 = vmatprep.mubr.f32.mxu0 0.0
    %1002 = vmatmul.mubr.f32.gmra.mrb[0].mxu0 %v650
    %v1003 = vpop.f32.mrb[0].mxu0
    %v1004 = vadd.f32 0.0, %v1003
    %v1005 = vpop.f32.mrb[0].mxu0
    %1006 = vmatprep.mubr.f32.mxu0 0.0
    %1007 = vmatmul.mubr.f32.gmra.mrb[0].mxu0 %v653
    %v1008 = vpop.f32.mrb[0].mxu0
    %v1009 = vadd.f32 0.0, %v1008
    %v1010 = vpop.f32.mrb[0].mxu0
    %1011 = vmatprep.mubr.f32.mxu0 0.0
    %1012 = vmatmul.mubr.f32.gmra.mrb[0].mxu0 %v656
    %v1013 = vpop.f32.mrb[0].mxu0
    %v1014 = vadd.f32 0.0, %v1013
    %v1015 = vpop.f32.mrb[0].mxu0
    %1016 = vmatprep.mubr.f32.mxu0 0.0
    %1017 = vmatmul.mubr.f32.gmra.mrb[0].mxu0 %v659
    %v1018 = vpop.f32.mrb[0].mxu0
    %v1019 = vadd.f32 0.0, %v1018
    %v1020 = vpop.f32.mrb[0].mxu0
    %1021 = vmatprep.mubr.f32.mxu0 0.0
    %1022 = vmatmul.mubr.f32.gmra.mrb[0].mxu0 %v662
    %v1023 = vpop.f32.mrb[0].mxu0
    %v1024 = vadd.f32 0.0, %v1023
    %v1025 = vpop.f32.mrb[0].mxu0
    %1026 = vmatprep.mubr.f32.mxu0 0.0
    %1027 = vmatmul.mubr.f32.gmra.mrb[0].mxu0 %v665
    %v1028 = vpop.f32.mrb[0].mxu0
    %v1029 = vadd.f32 0.0, %v1028
    %v1030 = vpop.f32.mrb[0].mxu0
    %1031 = vmatprep.mubr.f32.mxu0 0.0
    %1032 = vmatmul.mubr.f32.gmra.mrb[0].mxu0 %v668
    %v1033 = vpop.f32.mrb[0].mxu0
    %v1034 = vadd.f32 0.0, %v1033
    %v1035 = vpop.f32.mrb[0].mxu0
    %1036 = vmatprep.mubr.f32.mxu0 0.0
    %1037 = vmatmul.mubr.f32.gmra.mrb[0].mxu0 %v671
    %v1038 = vpop.f32.mrb[0].mxu0
    %v1039 = vadd.f32 0.0, %v1038
    %v1040 = vpop.f32.mrb[0].mxu0
    %1041 = vmatprep.mubr.f32.mxu0 0.0
    %1042 = vmatmul.mubr.f32.gmra.mrb[0].mxu0 %v674
    %v1043 = vpop.f32.mrb[0].mxu0
    %v1044 = vadd.f32 0.0, %v1043
    %v1045 = vpop.f32.mrb[0].mxu0
    %1046 = vmatprep.mubr.f32.mxu0 0.0
    %1047 = vmatmul.mubr.f32.gmra.mrb[0].mxu0 %v677
    %v1048 = vpop.f32.mrb[0].mxu0
    %v1049 = vadd.f32 0.0, %v1048
    %v1050 = vpop.f32.mrb[0].mxu0
    %1051 = vmatprep.mubr.f32.mxu0 0.0
    %1052 = vmatmul.mubr.f32.gmra.mrb[0].mxu0 %v680
    %v1053 = vpop.f32.mrb[0].mxu0
    %v1054 = vadd.f32 0.0, %v1053
    %v1055 = vpop.f32.mrb[0].mxu0
    %1056 = vmatprep.mubr.f32.mxu0 0.0
    %1057 = vmatmul.mubr.f32.gmra.mrb[0].mxu0 %v683
    %v1058 = vpop.f32.mrb[0].mxu0
    %v1059 = vadd.f32 0.0, %v1058
    %v1060 = vpop.f32.mrb[0].mxu0
    %1061 = vmatprep.mubr.f32.mxu0 0.0
    %1062 = vmatmul.mubr.f32.gmra.mrb[0].mxu0 %v686
    %v1063 = vpop.f32.mrb[0].mxu0
    %v1064 = vadd.f32 0.0, %v1063
    %v1065 = vpop.f32.mrb[0].mxu0
    %1066 = vmatprep.mubr.f32.mxu0 0.0
    %1067 = vmatmul.mubr.f32.gmra.mrb[0].mxu0 %v689
    %v1068 = vpop.f32.mrb[0].mxu0
    %v1069 = vadd.f32 0.0, %v1068
    %v1070 = vpop.f32.mrb[0].mxu0
    %1071 = vmatprep.mubr.f32.mxu0 0.0
    %1072 = vmatmul.mubr.f32.gmra.mrb[0].mxu0 %v692
    %v1073 = vpop.f32.mrb[0].mxu0
    %v1074 = vadd.f32 0.0, %v1073
    %v1075 = vpop.f32.mrb[0].mxu0
    %1076 = vmatprep.mubr.f32.mxu0 0.0
    %1077 = vmatmul.mubr.f32.gmra.mrb[0].mxu0 %v695
    %v1078 = vpop.f32.mrb[0].mxu0
    %v1079 = vadd.f32 0.0, %v1078
    %v1080 = vpop.f32.mrb[0].mxu0
    %1081 = vmatprep.mubr.f32.mxu0 0.0
    %1082 = vmatmul.mubr.f32.gmra.mrb[0].mxu0 %v698
    %v1083 = vpop.f32.mrb[0].mxu0
    %v1084 = vadd.f32 0.0, %v1083
    %v1085 = vpop.f32.mrb[0].mxu0
    %1086 = vmatprep.mubr.f32.mxu0 0.0
    %1087 = vmatmul.mubr.f32.gmra.mrb[0].mxu0 %v701
    %v1088 = vpop.f32.mrb[0].mxu0
    %v1089 = vadd.f32 0.0, %v1088
    %v1090 = vpop.f32.mrb[0].mxu0
    %1091 = vmatprep.mubr.f32.mxu0 0.0
    %1092 = vmatmul.mubr.f32.gmra.mrb[0].mxu0 %v704
    %v1093 = vpop.f32.mrb[0].mxu0
    %v1094 = vadd.f32 0.0, %v1093
    %v1095 = vpop.f32.mrb[0].mxu0
    %1096 = vmatprep.mubr.f32.mxu0 0.0
    %1097 = vmatmul.mubr.f32.gmra.mrb[0].mxu0 %v707
    %v1098 = vpop.f32.mrb[0].mxu0
    %v1099 = vadd.f32 0.0, %v1098
    %v1100 = vpop.f32.mrb[0].mxu0
    %1101 = vmatprep.mubr.f32.mxu0 0.0
    %1102 = vmatmul.mubr.f32.gmra.mrb[0].mxu0 %v710
    %v1103 = vpop.f32.mrb[0].mxu0
    %v1104 = vadd.f32 0.0, %v1103
    %v1105 = vpop.f32.mrb[0].mxu0
    %1106 = vmatprep.mubr.f32.mxu0 0.0
    %1107 = vmatmul.mubr.f32.gmra.mrb[0].mxu0 %v713
    %v1108 = vpop.f32.mrb[0].mxu0
    %v1109 = vadd.f32 0.0, %v1108
    %v1110 = vpop.f32.mrb[0].mxu0
    %1111 = vmatprep.mubr.f32.mxu0 0.0
    %1112 = vmatmul.mubr.f32.gmra.mrb[0].mxu0 %v716
    %v1113 = vpop.f32.mrb[0].mxu0
    %v1114 = vadd.f32 0.0, %v1113
    %v1115 = vpop.f32.mrb[0].mxu0
    %1116 = vmatprep.mubr.f32.mxu0 0.0
    %1117 = vmatmul.mubr.f32.gmra.mrb[0].mxu0 %v719
    %v1118 = vpop.f32.mrb[0].mxu0
    %v1119 = vadd.f32 0.0, %v1118
    %v1120 = vpop.f32.mrb[0].mxu0
    %1121 = vmatprep.mubr.f32.mxu0 0.0
    %1122 = vmatmul.mubr.f32.gmra.mrb[0].mxu0 %v722
    %v1123 = vpop.f32.mrb[0].mxu0
    %v1124 = vadd.f32 0.0, %v1123
    %v1125 = vpop.f32.mrb[0].mxu0
    %1126 = vmatprep.mubr.f32.mxu0 0.0
    %1127 = vmatmul.mubr.f32.gmra.mrb[0].mxu0 %v725
    %v1128 = vpop.f32.mrb[0].mxu0
    %v1129 = vadd.f32 0.0, %v1128
    %v1130 = vpop.f32.mrb[0].mxu0
    %1131 = vmatprep.mubr.f32.mxu0 0.0
    %1132 = vmatmul.mubr.f32.gmra.mrb[0].mxu0 %v728
    %v1133 = vpop.f32.mrb[0].mxu0
    %v1134 = vadd.f32 0.0, %v1133
    %v1135 = vpop.f32.mrb[0].mxu0
    %1136 = vmatprep.mubr.f32.mxu0 0.0
    %1137 = vmatmul.mubr.f32.gmra.mrb[0].mxu0 %v731
    %v1138 = vpop.f32.mrb[0].mxu0
    %v1139 = vadd.f32 0.0, %v1138
    %v1140 = vpop.f32.mrb[0].mxu0
    %1141 = vmatprep.mubr.f32.mxu0 0.0
    %1142 = vmatmul.mubr.f32.gmra.mrb[0].mxu0 %v734
    %v1143 = vpop.f32.mrb[0].mxu0
    %v1144 = vadd.f32 0.0, %v1143
    %v1145 = vpop.f32.mrb[0].mxu0
    %1146 = vmatprep.mubr.f32.mxu0 0.0
    %1147 = vmatmul.mubr.f32.gmra.mrb[0].mxu0 %v737
    %v1148 = vpop.f32.mrb[0].mxu0
    %v1149 = vadd.f32 0.0, %v1148
    %v1150 = vpop.f32.mrb[0].mxu0
    %1151 = vmatprep.mubr.f32.mxu0 0.0
    %1152 = vmatmul.mubr.f32.gmra.mrb[0].mxu0 %v740
    %v1153 = vpop.f32.mrb[0].mxu0
    %v1154 = vadd.f32 0.0, %v1153
    %v1155 = vpop.f32.mrb[0].mxu0
    %1156 = vmatprep.mubr.f32.mxu0 0.0
    %1157 = vmatmul.mubr.f32.gmra.mrb[0].mxu0 %v743
    %v1158 = vpop.f32.mrb[0].mxu0
    %v1159 = vadd.f32 0.0, %v1158
    %v1160 = vpop.f32.mrb[0].mxu0
    %1161 = vmatprep.mubr.f32.mxu0 0.0
    %1162 = vmatmul.mubr.f32.gmra.mrb[0].mxu0 %v746
    %v1163 = vpop.f32.mrb[0].mxu0
    %v1164 = vadd.f32 0.0, %v1163
    %v1165 = vpop.f32.mrb[0].mxu0
    %1166 = vmatprep.mubr.f32.mxu0 0.0
    %1167 = vmatmul.mubr.f32.gmra.mrb[0].mxu0 %v749
    %v1168 = vpop.f32.mrb[0].mxu0
    %v1169 = vadd.f32 0.0, %v1168
    %v1170 = vpop.f32.mrb[0].mxu0
    %1171 = vmatprep.mubr.f32.mxu0 0.0
    %1172 = vmatmul.mubr.f32.gmra.mrb[0].mxu0 %v752
    %v1173 = vpop.f32.mrb[0].mxu0
    %v1174 = vadd.f32 0.0, %v1173
    %v1175 = vpop.f32.mrb[0].mxu0
    %1176 = vmatprep.mubr.f32.mxu0 0.0
    %1177 = vmatmul.mubr.f32.gmra.mrb[0].mxu0 %v755
    %v1178 = vpop.f32.mrb[0].mxu0
    %v1179 = vadd.f32 0.0, %v1178
    %v1180 = vpop.f32.mrb[0].mxu0
    %1181 = vmatprep.mubr.f32.mxu0 0.0
    %1182 = vmatmul.mubr.f32.gmra.mrb[0].mxu0 %v758
    %v1183 = vpop.f32.mrb[0].mxu0
    %v1184 = vadd.f32 0.0, %v1183
    %v1185 = vpop.f32.mrb[0].mxu0
    %1186 = vmatprep.mubr.f32.mxu0 0.0
    %1187 = vmatmul.mubr.f32.gmra.mrb[0].mxu0 %v761
    %v1188 = vpop.f32.mrb[0].mxu0
    %v1189 = vadd.f32 0.0, %v1188
    %v1190 = vpop.f32.mrb[0].mxu0
    %1191 = vmatprep.mubr.f32.mxu0 0.0
    %1192 = vmatmul.mubr.f32.gmra.mrb[0].mxu0 %v764
    %v1193 = vpop.f32.mrb[0].mxu0
    %v1194 = vadd.f32 0.0, %v1193
    %v1195 = vpop.f32.mrb[0].mxu0
    %1196 = vmatprep.mubr.f32.mxu0 0.0
    %1197 = vmatmul.mubr.f32.gmra.mrb[0].mxu0 %v767
    %v1198 = vpop.f32.mrb[0].mxu0
    %v1199 = vadd.f32 0.0, %v1198
    %v1200 = vpop.f32.mrb[0].mxu0
    %1201 = vmatprep.mubr.f32.mxu0 0.0
    %1202 = vmatmul.mubr.f32.gmra.mrb[0].mxu0 %v770
    %v1203 = vpop.f32.mrb[0].mxu0
    %v1204 = vadd.f32 0.0, %v1203
    %v1205 = vpop.f32.mrb[0].mxu0
    %1206 = vmatprep.mubr.f32.mxu0 0.0
    %1207 = vmatmul.mubr.f32.gmra.mrb[0].mxu0 %v773
    %v1208 = vpop.f32.mrb[0].mxu0
    %v1209 = vadd.f32 0.0, %v1208
    %v1210 = vpop.f32.mrb[0].mxu0
    %1211 = vmatprep.mubr.f32.mxu0 0.0
    %1212 = vmatmul.mubr.f32.gmra.mrb[0].mxu0 %v776
    %v1213 = vpop.f32.mrb[0].mxu0
    %v1214 = vadd.f32 0.0, %v1213
    %v1215 = vpop.f32.mrb[0].mxu0
    %1216 = vmatprep.mubr.f32.mxu0 0.0
    %1217 = vmatmul.mubr.f32.gmra.mrb[0].mxu0 %v779
    %v1218 = vpop.f32.mrb[0].mxu0
    %v1219 = vadd.f32 0.0, %v1218
    %v1220 = vpop.f32.mrb[0].mxu0
    %1221 = vmatprep.mubr.f32.mxu0 0.0
    %1222 = vmatmul.mubr.f32.gmra.mrb[0].mxu0 %v782
    %v1223 = vpop.f32.mrb[0].mxu0
    %v1224 = vadd.f32 0.0, %v1223
    %v1225 = vpop.f32.mrb[0].mxu0
    %1226 = vmatprep.mubr.f32.mxu0 0.0
    %1227 = vmatmul.mubr.f32.gmra.mrb[0].mxu0 %v785
    %v1228 = vpop.f32.mrb[0].mxu0
    %v1229 = vadd.f32 0.0, %v1228
    %v1230 = vpop.f32.mrb[0].mxu0
    %1231 = vmatprep.mubr.f32.mxu0 0.0
    %1232 = vmatmul.mubr.f32.gmra.mrb[0].mxu0 %v788
    %v1233 = vpop.f32.mrb[0].mxu0
    %v1234 = vadd.f32 0.0, %v1233
    %v1235 = vpop.f32.mrb[0].mxu0
    %1236 = vmatprep.mubr.f32.mxu0 0.0
    %1237 = vmatmul.mubr.f32.gmra.mrb[0].mxu0 %v791
    %v1238 = vpop.f32.mrb[0].mxu0
    %v1239 = vadd.f32 0.0, %v1238
    %v1240 = vpop.f32.mrb[0].mxu0
    %1241 = vmatprep.mubr.f32.mxu0 0.0
    %1242 = vmatmul.mubr.f32.gmra.mrb[0].mxu0 %v794
    %v1243 = vpop.f32.mrb[0].mxu0
    %v1244 = vadd.f32 0.0, %v1243
    %v1245 = vpop.f32.mrb[0].mxu0
    %1246 = vmatprep.mubr.f32.mxu0 0.0
    %1247 = vmatmul.mubr.f32.gmra.mrb[0].mxu0 %v797
    %v1248 = vpop.f32.mrb[0].mxu0
    %v1249 = vadd.f32 0.0, %v1248
    %v1250 = vpop.f32.mrb[0].mxu0
    %1251 = vmatprep.mubr.f32.mxu0 0.0
    %1252 = vmatmul.mubr.f32.gmra.mrb[0].mxu0 %v800
    %v1253 = vpop.f32.mrb[0].mxu0
    %v1254 = vadd.f32 0.0, %v1253
    %v1255 = vpop.f32.mrb[0].mxu0
    %1256 = vmatprep.mubr.f32.mxu0 0.0
    %1257 = vmatmul.mubr.f32.gmra.mrb[0].mxu0 %v803
    %v1258 = vpop.f32.mrb[0].mxu0
    %v1259 = vadd.f32 0.0, %v1258
    %v1260 = vpop.f32.mrb[0].mxu0
    %1261 = vmatprep.mubr.f32.mxu0 0.0
    %1262 = vmatmul.mubr.f32.gmra.mrb[0].mxu0 %v806
    %v1263 = vpop.f32.mrb[0].mxu0
    %v1264 = vadd.f32 0.0, %v1263
    %v1265 = vpop.f32.mrb[0].mxu0
    %1266 = vmatprep.mubr.f32.mxu0 0.0
    %1267 = vmatmul.mubr.f32.gmra.mrb[0].mxu0 %v809
    %v1268 = vpop.f32.mrb[0].mxu0
    %v1269 = vadd.f32 0.0, %v1268
    %v1270 = vpop.f32.mrb[0].mxu0
    %1271 = vmatprep.mubr.f32.mxu0 0.0
    %1272 = vmatmul.mubr.f32.gmra.mrb[0].mxu0 %v812
    %v1273 = vpop.f32.mrb[0].mxu0
    %v1274 = vadd.f32 0.0, %v1273
    %v1275 = vpop.f32.mrb[0].mxu0
    %1276 = vmatprep.mubr.f32.mxu0 0.0
    %1277 = vmatmul.mubr.f32.gmra.mrb[0].mxu0 %v815
    %v1278 = vpop.f32.mrb[0].mxu0
    %v1279 = vadd.f32 0.0, %v1278
    %v1280 = vpop.f32.mrb[0].mxu0
    %1281 = vdwg.mxu0
    %1282 = vst [vmem:[#allocation2] sm:$0xff] %v884
    %1283 = vst [vmem:[#allocation2 + $0x8] sm:$0xff] %v889
    %1284 = vst [vmem:[#allocation2 + $0x10] sm:$0xff] %v894
    %1285 = vst [vmem:[#allocation2 + $0x18] sm:$0xff] %v899
    %1286 = vst [vmem:[#allocation2 + $0x20] sm:$0xff] %v904
    %1287 = vst [vmem:[#allocation2 + $0x28] sm:$0xff] %v909
    %1288 = vst [vmem:[#allocation2 + $0x30] sm:$0xff] %v914
    %1289 = vst [vmem:[#allocation2 + $0x38] sm:$0xff] %v919
    %1290 = vst [vmem:[#allocation2 + $0x40] sm:$0xff] %v924
    %1291 = vst [vmem:[#allocation2 + $0x48] sm:$0xff] %v929
    %1292 = vst [vmem:[#allocation2 + $0x50] sm:$0xff] %v934
    %1293 = vst [vmem:[#allocation2 + $0x58] sm:$0xff] %v939
    %1294 = vst [vmem:[#allocation2 + $0x60] sm:$0xff] %v944
    %1295 = vst [vmem:[#allocation2 + $0x68] sm:$0xff] %v949
    %1296 = vst [vmem:[#allocation2 + $0x70] sm:$0xff] %v954
    %1297 = vst [vmem:[#allocation2 + $0x78] sm:$0xff] %v959
    %1298 = vst [vmem:[#allocation2 + $0x80] sm:$0xff] %v964
    %1299 = vst [vmem:[#allocation2 + $0x88] sm:$0xff] %v969
    %1300 = vst [vmem:[#allocation2 + $0x90] sm:$0xff] %v974
    %1301 = vst [vmem:[#allocation2 + $0x98] sm:$0xff] %v979
    %1302 = vst [vmem:[#allocation2 + $0xa0] sm:$0xff] %v984
    %1303 = vst [vmem:[#allocation2 + $0xa8] sm:$0xff] %v989
    %1304 = vst [vmem:[#allocation2 + $0xb0] sm:$0xff] %v994
    %1305 = vst [vmem:[#allocation2 + $0xb8] sm:$0xff] %v999
    %1306 = vst [vmem:[#allocation2 + $0xc0] sm:$0xff] %v1004
    %1307 = vst [vmem:[#allocation2 + $0xc8] sm:$0xff] %v1009
    %1308 = vst [vmem:[#allocation2 + $0xd0] sm:$0xff] %v1014
    %1309 = vst [vmem:[#allocation2 + $0xd8] sm:$0xff] %v1019
    %1310 = vst [vmem:[#allocation2 + $0xe0] sm:$0xff] %v1024
    %1311 = vst [vmem:[#allocation2 + $0xe8] sm:$0xff] %v1029
    %1312 = vst [vmem:[#allocation2 + $0xf0] sm:$0xff] %v1034
    %1313 = vst [vmem:[#allocation2 + $0xf8] sm:$0xff] %v1039
    %1314 = vst [vmem:[#allocation2 + $0x100] sm:$0xff] %v1044
    %1315 = vst [vmem:[#allocation2 + $0x108] sm:$0xff] %v1049
    %1316 = vst [vmem:[#allocation2 + $0x110] sm:$0xff] %v1054
    %1317 = vst [vmem:[#allocation2 + $0x118] sm:$0xff] %v1059
    %1318 = vst [vmem:[#allocation2 + $0x120] sm:$0xff] %v1064
    %1319 = vst [vmem:[#allocation2 + $0x128] sm:$0xff] %v1069
    %1320 = vst [vmem:[#allocation2 + $0x130] sm:$0xff] %v1074
    %1321 = vst [vmem:[#allocation2 + $0x138] sm:$0xff] %v1079
    %1322 = vst [vmem:[#allocation2 + $0x140] sm:$0xff] %v1084
    %1323 = vst [vmem:[#allocation2 + $0x148] sm:$0xff] %v1089
    %1324 = vst [vmem:[#allocation2 + $0x150] sm:$0xff] %v1094
    %1325 = vst [vmem:[#allocation2 + $0x158] sm:$0xff] %v1099
    %1326 = vst [vmem:[#allocation2 + $0x160] sm:$0xff] %v1104
    %1327 = vst [vmem:[#allocation2 + $0x168] sm:$0xff] %v1109
    %1328 = vst [vmem:[#allocation2 + $0x170] sm:$0xff] %v1114
    %1329 = vst [vmem:[#allocation2 + $0x178] sm:$0xff] %v1119
    %1330 = vst [vmem:[#allocation2 + $0x180] sm:$0xff] %v1124
    %1331 = vst [vmem:[#allocation2 + $0x188] sm:$0xff] %v1129
    %1332 = vst [vmem:[#allocation2 + $0x190] sm:$0xff] %v1134
    %1333 = vst [vmem:[#allocation2 + $0x198] sm:$0xff] %v1139
    %1334 = vst [vmem:[#allocation2 + $0x1a0] sm:$0xff] %v1144
    %1335 = vst [vmem:[#allocation2 + $0x1a8] sm:$0xff] %v1149
    %1336 = vst [vmem:[#allocation2 + $0x1b0] sm:$0xff] %v1154
    %1337 = vst [vmem:[#allocation2 + $0x1b8] sm:$0xff] %v1159
    %1338 = vst [vmem:[#allocation2 + $0x1c0] sm:$0xff] %v1164
    %1339 = vst [vmem:[#allocation2 + $0x1c8] sm:$0xff] %v1169
    %1340 = vst [vmem:[#allocation2 + $0x1d0] sm:$0xff] %v1174
    %1341 = vst [vmem:[#allocation2 + $0x1d8] sm:$0xff] %v1179
    %1342 = vst [vmem:[#allocation2 + $0x1e0] sm:$0xff] %v1184
    %1343 = vst [vmem:[#allocation2 + $0x1e8] sm:$0xff] %v1189
    %1344 = vst [vmem:[#allocation2 + $0x1f0] sm:$0xff] %v1194
    %1345 = vst [vmem:[#allocation2 + $0x1f8] sm:$0xff] %v1199
    %1346 = vst [vmem:[#allocation2 + $0x200] sm:$0xff] %v1204
    %1347 = vst [vmem:[#allocation2 + $0x208] sm:$0xff] %v1209
    %1348 = vst [vmem:[#allocation2 + $0x210] sm:$0xff] %v1214
    %1349 = vst [vmem:[#allocation2 + $0x218] sm:$0xff] %v1219
    %1350 = vst [vmem:[#allocation2 + $0x220] sm:$0xff] %v1224
    %1351 = vst [vmem:[#allocation2 + $0x228] sm:$0xff] %v1229
    %1352 = vst [vmem:[#allocation2 + $0x230] sm:$0xff] %v1234
    %1353 = vst [vmem:[#allocation2 + $0x238] sm:$0xff] %v1239
    %1354 = vst [vmem:[#allocation2 + $0x240] sm:$0xff] %v1244
    %1355 = vst [vmem:[#allocation2 + $0x248] sm:$0xff] %v1249
    %1356 = vst [vmem:[#allocation2 + $0x250] sm:$0xff] %v1254
    %1357 = vst [vmem:[#allocation2 + $0x258] sm:$0xff] %v1259
    %1358 = vst [vmem:[#allocation2 + $0x260] sm:$0xff] %v1264
    %1359 = vst [vmem:[#allocation2 + $0x268] sm:$0xff] %v1269
    %1360 = vst [vmem:[#allocation2 + $0x270] sm:$0xff] %v1274
    %1361 = vst [vmem:[#allocation2 + $0x278] sm:$0xff] %v1279
    // Predicated region
    $region10: #{tpu_custom_call.1} parent=1 // pred_check
      _
    $region11: #{tpu_custom_call.1} parent=1 // pred_check_branch
      %1363 = sbr.rel (0) target = $region13
    $region12: #{tpu_custom_call.1} parent=1 // pred_region
      %s1365 = ssub.s32 10240, 10240
      %1366 = vsyncadd [#allocation3], %s1365
      %s1367 = sshll.u32 [#allocation2], 4
      %s1368 = int_to_ptr.vmem [resolvable:$true] %s1367
      %1373 = dma.vmem_to_hbm [thread:$0]  %s1368, 10240, %s2, [#allocation3], 128, 128, 8
    $region13: #{tpu_custom_call.1} parent=1 // pred_fallthru
      _
    // Predicated region
    $region14: #{tpu_custom_call.1} parent=1 // pred_check
      _
    $region15: #{tpu_custom_call.1} parent=1 // pred_check_branch
      %1375 = sbr.rel (0) target = $region17
    $region16: #{tpu_custom_call.1} parent=1 // pred_region
      %1376 = dma.done [#allocation3], 10240
    $region17: #{tpu_custom_call.1} parent=1 // pred_fallthru
      _
    %1377 = vsyncpa [#allocation3], 1

</llo_original>
